<compile_context>
chip_gen: v7x
topology: tpu7x:2x2x1
jax: 0.10.0
libtpu: 0.0.40
codegen_flags: <defaults>
</compile_context>

<pallas_src>
import jax
import jax.numpy as jnp
from jax import lax
from jax.experimental import pallas as pl
from jax.experimental.pallas import tpu as pltpu

_INV_SQRT2 = 0.7071067811865476
_SQRT_2_OVER_PI = 0.7978845608028654


def _gelu(x):
    # tanh-approximation GELU (== jax.nn.gelu(approximate=True)); deviates
    # from the exact erf GELU of nn.GELU() by <~1e-3 absolute.
    return 0.5 * x * (1.0 + jnp.tanh(_SQRT_2_OVER_PI * (x + 0.044715 * (x * x * x))))


# ---------------------------------------------------------------------------
# Kernel: one grid step == one batch element, everything lane-dense (H, W*C).
# ---------------------------------------------------------------------------
def _residual_block_kernel(
        x_ref,        # (1, H, W*Cin)        bf16   input rows
        band1_ref,    # (3, W*Cin,  W*Cout)  bf16   conv1 3x3 row matrices
        band2_ref,    # (3, W*Cout, W*Cout)  bf16   conv2 3x3 row matrices
        diag3_ref,    # (W*Cin, W*Cout)      bf16   conv3 1x1 (block-diagonal)
        pool_ref,     # (W*Cout, Cout)       f32    0/1 channel-pooling matrix
        sew1_ref,     # (Cout, R)            f32    SE reduce weight
        sew2_ref,     # (R, Cout)            f32    SE expand weight
        tile_ref,     # (Cout, W*Cout)       f32    0/1 gate-tiling matrix
        aff_ref,      # (8, W*Cout)          f32    [b1,s1,t1, b2,s2,t2, s3,t3]
        seb1_ref,     # (1, R)               f32
        seb2_ref,     # (1, Cout)            f32
        o_ref):       # (1, H, W*Cout)              output rows
    H, WCo = o_ref.shape[1], o_ref.shape[2]
    Cout = pool_ref.shape[1]
    inv_hw = 1.0 / float(H * (WCo // Cout))

    x = x_ref[0]                                   # (H, W*Cin) bf16
    aff = aff_ref[...]                             # (8, W*Cout) f32
    b1, s1, t1 = aff[0:1], aff[1:2], aff[2:3]
    b2, s2, t2 = aff[3:4], aff[4:5], aff[5:6]
    s3, t3 = aff[6:7], aff[7:8]

    row_id = lax.broadcasted_iota(jnp.int32, (H, WCo), 0)
    is_top = row_id == 0
    is_bot = row_id == H - 1

    def conv3x3(rows_bf16, band_ref):
        # Three lane-dense MXU matmuls on the SAME rows; kernel-height offsets
        # are applied to the outputs with an XLU roll plus a boundary mask.
        p_up = jnp.dot(rows_bf16, band_ref[0], preferred_element_type=jnp.float32)
        p_mid = jnp.dot(rows_bf16, band_ref[1], preferred_element_type=jnp.float32)
        p_dn = jnp.dot(rows_bf16, band_ref[2], preferred_element_type=jnp.float32)
        from_above = jnp.where(is_top, 0.0, pltpu.roll(p_up, shift=1, axis=0))
        from_below = jnp.where(is_bot, 0.0, pltpu.roll(p_dn, shift=H - 1, axis=0))
        return p_mid + from_above + from_below

    # --- branch: Conv3x3 -> GELU -> BN  (ConvbnGelu #1) ----------------------
    x1 = _gelu(conv3x3(x, band1_ref) + b1) * s1 + t1                 # f32 (H, WCo)
    # --- Conv3x3 -> GELU -> BN  (ConvbnGelu #2) ------------------------------
    x2 = _gelu(conv3x3(x1.astype(jnp.bfloat16), band2_ref) + b2) * s2 + t2
    # --- skip: Conv1x1 -> BN (conv bias folded into t3) ----------------------
    x3 = jnp.dot(x, diag3_ref[...], preferred_element_type=jnp.float32) * s3 + t3

    # --- SE attention on the skip branch -------------------------------------
    rowsum = jnp.sum(x3, axis=0, keepdims=True)                      # (1, WCo)
    pooled = jnp.dot(rowsum, pool_ref[...],
                     preferred_element_type=jnp.float32) * inv_hw    # (1, Cout)
    z = jnp.dot(pooled, sew1_ref[...],
                preferred_element_type=jnp.float32) + seb1_ref[...]
    z = z * jax.nn.sigmoid(z)                                        # SiLU
    gate = jax.nn.sigmoid(
        jnp.dot(z, sew2_ref[...], preferred_element_type=jnp.float32)
        + seb2_ref[...])                                             # (1, Cout)
    gate_rows = jnp.dot(gate, tile_ref[...],
                        preferred_element_type=jnp.float32)          # (1, WCo)

    # --- residual add + ReLU, lane-dense store --------------------------------
    y = jnp.maximum(x2 + x3 * gate_rows, 0.0)
    o_ref[...] = y.reshape(1, H, WCo).astype(o_ref.dtype)


# ---------------------------------------------------------------------------
# Wrapper helpers
# ---------------------------------------------------------------------------
def _conv3x3_row_matrices(w_hwio, W):
    """(3,3,Ci,Co) HWIO weights -> (3, W*Ci, W*Co) block-tridiagonal matrices.

    out_row[h] = sum_dy in_row[h+dy-1] @ B[dy], with the width-boundary
    (padding=1) baked into the zero structure of B.
    """
    Ci, Co = w_hwio.shape[2], w_hwio.shape[3]
    wi = jnp.arange(W)[:, None]                    # input column
    wo = jnp.arange(W)[None, :]                    # output column
    dx = wi - wo + 1                               # kernel column index
    valid = (dx >= 0) & (dx <= 2)
    wg = w_hwio[:, jnp.clip(dx, 0, 2), :, :]       # (3, W, W, Ci, Co)
    wg = jnp.where(valid[None, :, :, None, None], wg, 0.0)
    return wg.transpose(0, 1, 3, 2, 4).reshape(3, W * Ci, W * Co)


def residual_block(x_nchw, p):
    N, Cin, H, W = x_nchw.shape
    Cout = p["w1"].shape[-1]
    R = p["se_w1"].shape[-1]
    WCi, WCo = W * Cin, W * Cout

    # NCHW -> NHWC -> lane-dense rows (N, H, W*Cin); bf16 feeds the MXU.
    x_rows = (jnp.transpose(x_nchw, (0, 2, 3, 1))
              .reshape(N, H, WCi).astype(jnp.bfloat16))

    # Convs as row matrices (bf16 MXU operands).
    band1 = _conv3x3_row_matrices(p["w1"], W).astype(jnp.bfloat16)   # (3,WCi,WCo)
    band2 = _conv3x3_row_matrices(p["w2"], W).astype(jnp.bfloat16)   # (3,WCo,WCo)
    diag3 = jnp.kron(jnp.eye(W, dtype=jnp.float32),
                     p["w3"].astype(jnp.float32)).astype(jnp.bfloat16)  # (WCi,WCo)

    # Per-channel affine params tiled along W so they broadcast on lanes (f32).
    tile_c = lambda v: jnp.tile(v.astype(jnp.float32).reshape(1, -1), (1, W))
    shift3 = p["b3"] * p["bn3_scale"] + p["bn3_shift"]   # fold conv3 bias into BN3
    aff = jnp.concatenate([
        tile_c(p["b1"]), tile_c(p["bn1_scale"]), tile_c(p["bn1_shift"]),
        tile_c(p["b2"]), tile_c(p["bn2_scale"]), tile_c(p["bn2_shift"]),
        tile_c(p["bn3_scale"]), tile_c(shift3),
    ], axis=0)                                                        # (8, WCo)

    # SE helpers: 0/1 matrices that pool rows -> channels and tile gate -> rows.
    pool_m = jnp.tile(jnp.eye(Cout, dtype=jnp.float32), (W, 1))       # (WCo, Cout)
    tile_m = jnp.tile(jnp.eye(Cout, dtype=jnp.float32), (1, W))       # (Cout, WCo)

    operands = (
        x_rows, band1, band2, diag3, pool_m,
        p["se_w1"].astype(jnp.float32), p["se_w2"].astype(jnp.float32),
        tile_m, aff,
        p["se_b1"].reshape(1, R).astype(jnp.float32),
        p["se_b2"].reshape(1, Cout).astype(jnp.float32),
    )

    def replicated(a):
        zeros = (0,) * a.ndim
        return pl.BlockSpec(a.shape, lambda b, _z=zeros: _z)

    in_specs = [pl.BlockSpec((1, H, WCi), lambda b: (b, 0, 0))]
    in_specs += [replicated(a) for a in operands[1:]]

    y_rows = pl.pallas_call(
        _residual_block_kernel,
        out_shape=jax.ShapeDtypeStruct((N, H, WCo), x_nchw.dtype),
        grid_spec=pltpu.PrefetchScalarGridSpec(
            num_scalar_prefetch=0,
            grid=(N,),
            in_specs=in_specs,
            out_specs=pl.BlockSpec((1, H, WCo), lambda b: (b, 0, 0)),
        ),
        compiler_params=pltpu.CompilerParams(
            dimension_semantics=("parallel",),     # v7x: shard batch over 2 TCs
            vmem_limit_bytes=32 * 1024 * 1024,
        ),
    )(*operands)

    # (N, H, W*Cout) -> NCHW
    return jnp.transpose(y_rows.reshape(N, H, W, Cout), (0, 3, 1, 2))


# ---------------------------------------------------------------------------
# Deterministic synthetic parameters (shapes from ResidualBlock.__init__)
# ---------------------------------------------------------------------------
def init_params(key, in_c, out_c, reduced_dim=16, eps=1e-5):
    ks = jax.random.split(key, 24)
    n = lambda k, s, scale=0.1: scale * jax.random.normal(k, s, jnp.float32)
    u = lambda k, s: jax.random.uniform(k, s, jnp.float32, 0.5, 1.5)

    p = {
        "w1": n(ks[0], (3, 3, in_c, out_c)),
        "b1": n(ks[1], (out_c,)),
        "w2": n(ks[2], (3, 3, out_c, out_c)),
        "b2": n(ks[3], (out_c,)),
        "w3": n(ks[4], (in_c, out_c)),
        "b3": n(ks[5], (out_c,)),
        "se_w1": n(ks[6], (out_c, reduced_dim)),
        "se_b1": n(ks[7], (reduced_dim,)),
        "se_w2": n(ks[8], (reduced_dim, out_c)),
        "se_b2": n(ks[9], (out_c,)),
    }
    # BatchNorm2d (inference): fold gamma / beta / running stats -> scale, shift
    for i, name in enumerate(("bn1", "bn2", "bn3")):
        gamma = u(ks[10 + 4 * i], (out_c,))
        beta = n(ks[11 + 4 * i], (out_c,))
        mean = n(ks[12 + 4 * i], (out_c,))
        var = u(ks[13 + 4 * i], (out_c,))
        scale = gamma * lax.rsqrt(var + eps)
        p[name + "_scale"] = scale
        p[name + "_shift"] = beta - mean * scale
    return p


# ---------------------------------------------------------------------------
# Pure-JAX/XLA references
# ---------------------------------------------------------------------------
def reference(x_nchw, p, *, match_kernel_numerics=False):
    """match_kernel_numerics=False: strict module semantics (f32, erf GELU).
       match_kernel_numerics=True : same numerics policy as the kernel
                                    (bf16 MXU operands, f32 accum, tanh GELU)."""
    f32 = jnp.float32
    x = jnp.transpose(x_nchw, (0, 2, 3, 1)).astype(f32)
    if match_kernel_numerics:
        mxu_dt = jnp.bfloat16
        gelu = _gelu
    else:
        mxu_dt = f32
        gelu = lambda v: 0.5 * v * (1.0 + lax.erf(v * _INV_SQRT2))

    def conv3x3(inp, w, b):
        out = lax.conv_general_dilated(
            inp.astype(mxu_dt), w.astype(mxu_dt), window_strides=(1, 1),
            padding=((1, 1), (1, 1)),
            dimension_numbers=("NHWC", "HWIO", "NHWC"),
            preferred_element_type=f32)
        return out + b

    x1 = gelu(conv3x3(x, p["w1"], p["b1"])) * p["bn1_scale"] + p["bn1_shift"]
    x2 = gelu(conv3x3(x1, p["w2"], p["b2"])) * p["bn2_scale"] + p["bn2_shift"]
    x3 = jnp.einsum("nhwc,cd->nhwd", x.astype(mxu_dt), p["w3"].astype(mxu_dt),
                    preferred_element_type=f32) + p["b3"]
    x3 = x3 * p["bn3_scale"] + p["bn3_shift"]
    pooled = jnp.mean(x3, axis=(1, 2), keepdims=True)
    h = jax.nn.silu(jnp.einsum("nhwc,cr->nhwr", pooled, p["se_w1"]) + p["se_b1"])
    gate = jax.nn.sigmoid(jnp.einsum("nhwr,rc->nhwc", h, p["se_w2"]) + p["se_b2"])
    y = jax.nn.relu(x2 + x3 * gate)
    return jnp.transpose(y, (0, 3, 1, 2))


if __name__ == "__main__":
    N, in_c, out_c, H, W = 2, 4, 8, 16, 16

    key = jax.random.PRNGKey(0)
    kx, kp = jax.random.split(key)
    x = jax.random.normal(kx, (N, in_c, H, W), jnp.float32)
    params = init_params(kp, in_c, out_c)

    y = jax.block_until_ready(residual_block(x, params))
    assert y.shape == (N, out_c, H, W), y.shape

    # 1) Tight check vs an XLA reference using the kernel's numerics policy
    #    (validates the row-matmul conv / SE / BN-fold implementation).
    y_policy = reference(x, params, match_kernel_numerics=True)
    err_policy = float(jnp.max(jnp.abs(y - y_policy)))
    assert err_policy < 2e-3, f"kernel vs policy-matched reference: {err_policy}"

    # 2) Loose check vs strict f32 / exact-erf module semantics (budget covers
    #    bf16 MXU operands + tanh-GELU approximation).
    y_exact = reference(x, params, match_kernel_numerics=False)
    err_exact = float(jnp.max(jnp.abs(y - y_exact)))
    assert err_exact < 5e-2, f"kernel vs strict-f32 reference: {err_exact}"

    print("KERNEL_OK")
</pallas_src>

<mosaic_0001>
module attributes {stable_mosaic.version = 11 : i64} {
  func.func @_residual_block_kernel(%arg0: i32, %arg1: memref<1x16x64xbf16, #tpu.memory_space<vmem>>, %arg2: memref<3x64x128xbf16, #tpu.memory_space<vmem>>, %arg3: memref<3x128x128xbf16, #tpu.memory_space<vmem>>, %arg4: memref<64x128xbf16, #tpu.memory_space<vmem>>, %arg5: memref<128x8xf32, #tpu.memory_space<vmem>>, %arg6: memref<8x16xf32, #tpu.memory_space<vmem>>, %arg7: memref<16x8xf32, #tpu.memory_space<vmem>>, %arg8: memref<8x128xf32, #tpu.memory_space<vmem>>, %arg9: memref<8x128xf32, #tpu.memory_space<vmem>>, %arg10: memref<1x16xf32, #tpu.memory_space<vmem>>, %arg11: memref<1x8xf32, #tpu.memory_space<vmem>>, %arg12: memref<1x16x128xf32, #tpu.memory_space<vmem>>) attributes {dimension_semantics = [#tpu.dimension_semantics<parallel>], iteration_bounds = array<i64: 2>, scalar_prefetch = 0 : i64, scratch_operands = 0 : i64, tpu.core_type = #tpu.core_type<tc>, window_params = [{transform_indices = @transform_0, window_bounds = array<i64: 1, 16, 64>}, {pipeline_mode = #tpu.pipeline_mode<synchronous>, transform_indices = @transform_1, window_bounds = array<i64: 3, 64, 128>}, {pipeline_mode = #tpu.pipeline_mode<synchronous>, transform_indices = @transform_2, window_bounds = array<i64: 3, 128, 128>}, {pipeline_mode = #tpu.pipeline_mode<synchronous>, transform_indices = @transform_3, window_bounds = array<i64: 64, 128>}, {pipeline_mode = #tpu.pipeline_mode<synchronous>, transform_indices = @transform_4, window_bounds = array<i64: 128, 8>}, {pipeline_mode = #tpu.pipeline_mode<synchronous>, transform_indices = @transform_5, window_bounds = array<i64: 8, 16>}, {pipeline_mode = #tpu.pipeline_mode<synchronous>, transform_indices = @transform_6, window_bounds = array<i64: 16, 8>}, {pipeline_mode = #tpu.pipeline_mode<synchronous>, transform_indices = @transform_7, window_bounds = array<i64: 8, 128>}, {pipeline_mode = #tpu.pipeline_mode<synchronous>, transform_indices = @transform_8, window_bounds = array<i64: 8, 128>}, {pipeline_mode = #tpu.pipeline_mode<synchronous>, transform_indices = @transform_9, window_bounds = array<i64: 1, 16>}, {pipeline_mode = #tpu.pipeline_mode<synchronous>, transform_indices = @transform_10, window_bounds = array<i64: 1, 8>}, {transform_indices = @transform_11, window_bounds = array<i64: 1, 16, 128>}]} {
    %c0 = arith.constant 0 : index
    %c0_0 = arith.constant 0 : index
    %c0_1 = arith.constant 0 : index
    %0 = vector.load %arg1[%c0, %c0_0, %c0_1] : memref<1x16x64xbf16, #tpu.memory_space<vmem>>, vector<1x16x64xbf16>
    %1 = vector.shape_cast %0 : vector<1x16x64xbf16> to vector<16x64xbf16>
    %c0_2 = arith.constant 0 : index
    %c0_3 = arith.constant 0 : index
    %2 = vector.load %arg9[%c0_2, %c0_3] : memref<8x128xf32, #tpu.memory_space<vmem>>, vector<8x128xf32>
    %3 = vector.extract_strided_slice %2 {offsets = [0, 0], sizes = [1, 128], strides = [1, 1]} : vector<8x128xf32> to vector<1x128xf32>
    %4 = vector.extract_strided_slice %2 {offsets = [1, 0], sizes = [1, 128], strides = [1, 1]} : vector<8x128xf32> to vector<1x128xf32>
    %5 = vector.extract_strided_slice %2 {offsets = [2, 0], sizes = [1, 128], strides = [1, 1]} : vector<8x128xf32> to vector<1x128xf32>
    %6 = vector.extract_strided_slice %2 {offsets = [3, 0], sizes = [1, 128], strides = [1, 1]} : vector<8x128xf32> to vector<1x128xf32>
    %7 = vector.extract_strided_slice %2 {offsets = [4, 0], sizes = [1, 128], strides = [1, 1]} : vector<8x128xf32> to vector<1x128xf32>
    %8 = vector.extract_strided_slice %2 {offsets = [5, 0], sizes = [1, 128], strides = [1, 1]} : vector<8x128xf32> to vector<1x128xf32>
    %9 = vector.extract_strided_slice %2 {offsets = [6, 0], sizes = [1, 128], strides = [1, 1]} : vector<8x128xf32> to vector<1x128xf32>
    %10 = vector.extract_strided_slice %2 {offsets = [7, 0], sizes = [1, 128], strides = [1, 1]} : vector<8x128xf32> to vector<1x128xf32>
    %11 = tpu.iota {dimensions = array<i32: 0>} : vector<16x128xi32>
    %c0_i32 = arith.constant 0 : i32
    %12 = vector.broadcast %c0_i32 : i32 to vector<16x128xi32>
    %13 = arith.cmpi eq, %11, %12 : vector<16x128xi32>
    %c15_i32 = arith.constant 15 : i32
    %14 = vector.broadcast %c15_i32 : i32 to vector<16x128xi32>
    %15 = arith.cmpi eq, %11, %14 : vector<16x128xi32>
    %c0_4 = arith.constant 0 : index
    %c0_5 = arith.constant 0 : index
    %c0_6 = arith.constant 0 : index
    %16 = vector.load %arg2[%c0_4, %c0_5, %c0_6] : memref<3x64x128xbf16, #tpu.memory_space<vmem>>, vector<1x64x128xbf16>
    %17 = vector.shape_cast %16 : vector<1x64x128xbf16> to vector<64x128xbf16>
    %cst = arith.constant dense<0.000000e+00> : vector<16x128xf32>
    %18 = tpu.matmul %1, %17, %cst {dimension_numbers = #tpu.dot_dimension_numbers<[1], [0], [0], [1], [0, 0, 1, 1], [], []>} : vector<16x64xbf16>, vector<64x128xbf16>, vector<16x128xf32> -> vector<16x128xf32>
    %c1 = arith.constant 1 : index
    %c0_7 = arith.constant 0 : index
    %c0_8 = arith.constant 0 : index
    %19 = vector.load %arg2[%c1, %c0_7, %c0_8] : memref<3x64x128xbf16, #tpu.memory_space<vmem>>, vector<1x64x128xbf16>
    %20 = vector.shape_cast %19 : vector<1x64x128xbf16> to vector<64x128xbf16>
    %cst_9 = arith.constant dense<0.000000e+00> : vector<16x128xf32>
    %21 = tpu.matmul %1, %20, %cst_9 {dimension_numbers = #tpu.dot_dimension_numbers<[1], [0], [0], [1], [0, 0, 1, 1], [], []>} : vector<16x64xbf16>, vector<64x128xbf16>, vector<16x128xf32> -> vector<16x128xf32>
    %c2 = arith.constant 2 : index
    %c0_10 = arith.constant 0 : index
    %c0_11 = arith.constant 0 : index
    %22 = vector.load %arg2[%c2, %c0_10, %c0_11] : memref<3x64x128xbf16, #tpu.memory_space<vmem>>, vector<1x64x128xbf16>
    %23 = vector.shape_cast %22 : vector<1x64x128xbf16> to vector<64x128xbf16>
    %cst_12 = arith.constant dense<0.000000e+00> : vector<16x128xf32>
    %24 = tpu.matmul %1, %23, %cst_12 {dimension_numbers = #tpu.dot_dimension_numbers<[1], [0], [0], [1], [0, 0, 1, 1], [], []>} : vector<16x64xbf16>, vector<64x128xbf16>, vector<16x128xf32> -> vector<16x128xf32>
    %c1_i32 = arith.constant 1 : i32
    %25 = tpu.dynamic_rotate %18 by %c1_i32 dim 0 : vector<16x128xf32>, i32 -> vector<16x128xf32>
    %cst_13 = arith.constant 0.000000e+00 : f32
    %26 = vector.broadcast %cst_13 : f32 to vector<16x128xf32>
    %27 = arith.select %13, %26, %25 : vector<16x128xi1>, vector<16x128xf32>
    %c15_i32_14 = arith.constant 15 : i32
    %28 = tpu.dynamic_rotate %24 by %c15_i32_14 dim 0 : vector<16x128xf32>, i32 -> vector<16x128xf32>
    %cst_15 = arith.constant 0.000000e+00 : f32
    %29 = vector.broadcast %cst_15 : f32 to vector<16x128xf32>
    %30 = arith.select %15, %29, %28 : vector<16x128xi1>, vector<16x128xf32>
    %31 = arith.addf %21, %27 : vector<16x128xf32>
    %32 = arith.addf %31, %30 : vector<16x128xf32>
    %33 = vector.broadcast %3 : vector<1x128xf32> to vector<16x128xf32>
    %34 = arith.addf %32, %33 : vector<16x128xf32>
    %cst_16 = arith.constant 5.000000e-01 : f32
    %35 = vector.broadcast %cst_16 : f32 to vector<16x128xf32>
    %36 = arith.mulf %35, %34 : vector<16x128xf32>
    %37 = arith.mulf %34, %34 : vector<16x128xf32>
    %38 = arith.mulf %37, %34 : vector<16x128xf32>
    %cst_17 = arith.constant 4.471500e-02 : f32
    %39 = vector.broadcast %cst_17 : f32 to vector<16x128xf32>
    %40 = arith.mulf %39, %38 : vector<16x128xf32>
    %41 = arith.addf %34, %40 : vector<16x128xf32>
    %cst_18 = arith.constant 0.797884583 : f32
    %42 = vector.broadcast %cst_18 : f32 to vector<16x128xf32>
    %43 = arith.mulf %42, %41 : vector<16x128xf32>
    %44 = math.tanh %43 : vector<16x128xf32>
    %cst_19 = arith.constant 1.000000e+00 : f32
    %45 = vector.broadcast %cst_19 : f32 to vector<16x128xf32>
    %46 = arith.addf %45, %44 : vector<16x128xf32>
    %47 = arith.mulf %36, %46 : vector<16x128xf32>
    %48 = vector.broadcast %4 : vector<1x128xf32> to vector<16x128xf32>
    %49 = arith.mulf %47, %48 : vector<16x128xf32>
    %50 = vector.broadcast %5 : vector<1x128xf32> to vector<16x128xf32>
    %51 = arith.addf %49, %50 : vector<16x128xf32>
    %52 = arith.truncf %51 : vector<16x128xf32> to vector<16x128xbf16>
    %c0_20 = arith.constant 0 : index
    %c0_21 = arith.constant 0 : index
    %c0_22 = arith.constant 0 : index
    %53 = vector.load %arg3[%c0_20, %c0_21, %c0_22] : memref<3x128x128xbf16, #tpu.memory_space<vmem>>, vector<1x128x128xbf16>
    %54 = vector.shape_cast %53 : vector<1x128x128xbf16> to vector<128x128xbf16>
    %cst_23 = arith.constant dense<0.000000e+00> : vector<16x128xf32>
    %55 = tpu.matmul %52, %54, %cst_23 {dimension_numbers = #tpu.dot_dimension_numbers<[1], [0], [0], [1], [0, 0, 1, 1], [], []>} : vector<16x128xbf16>, vector<128x128xbf16>, vector<16x128xf32> -> vector<16x128xf32>
    %c1_24 = arith.constant 1 : index
    %c0_25 = arith.constant 0 : index
    %c0_26 = arith.constant 0 : index
    %56 = vector.load %arg3[%c1_24, %c0_25, %c0_26] : memref<3x128x128xbf16, #tpu.memory_space<vmem>>, vector<1x128x128xbf16>
    %57 = vector.shape_cast %56 : vector<1x128x128xbf16> to vector<128x128xbf16>
    %cst_27 = arith.constant dense<0.000000e+00> : vector<16x128xf32>
    %58 = tpu.matmul %52, %57, %cst_27 {dimension_numbers = #tpu.dot_dimension_numbers<[1], [0], [0], [1], [0, 0, 1, 1], [], []>} : vector<16x128xbf16>, vector<128x128xbf16>, vector<16x128xf32> -> vector<16x128xf32>
    %c2_28 = arith.constant 2 : index
    %c0_29 = arith.constant 0 : index
    %c0_30 = arith.constant 0 : index
    %59 = vector.load %arg3[%c2_28, %c0_29, %c0_30] : memref<3x128x128xbf16, #tpu.memory_space<vmem>>, vector<1x128x128xbf16>
    %60 = vector.shape_cast %59 : vector<1x128x128xbf16> to vector<128x128xbf16>
    %cst_31 = arith.constant dense<0.000000e+00> : vector<16x128xf32>
    %61 = tpu.matmul %52, %60, %cst_31 {dimension_numbers = #tpu.dot_dimension_numbers<[1], [0], [0], [1], [0, 0, 1, 1], [], []>} : vector<16x128xbf16>, vector<128x128xbf16>, vector<16x128xf32> -> vector<16x128xf32>
    %c1_i32_32 = arith.constant 1 : i32
    %62 = tpu.dynamic_rotate %55 by %c1_i32_32 dim 0 : vector<16x128xf32>, i32 -> vector<16x128xf32>
    %cst_33 = arith.constant 0.000000e+00 : f32
    %63 = vector.broadcast %cst_33 : f32 to vector<16x128xf32>
    %64 = arith.select %13, %63, %62 : vector<16x128xi1>, vector<16x128xf32>
    %c15_i32_34 = arith.constant 15 : i32
    %65 = tpu.dynamic_rotate %61 by %c15_i32_34 dim 0 : vector<16x128xf32>, i32 -> vector<16x128xf32>
    %cst_35 = arith.constant 0.000000e+00 : f32
    %66 = vector.broadcast %cst_35 : f32 to vector<16x128xf32>
    %67 = arith.select %15, %66, %65 : vector<16x128xi1>, vector<16x128xf32>
    %68 = arith.addf %58, %64 : vector<16x128xf32>
    %69 = arith.addf %68, %67 : vector<16x128xf32>
    %70 = vector.broadcast %6 : vector<1x128xf32> to vector<16x128xf32>
    %71 = arith.addf %69, %70 : vector<16x128xf32>
    %cst_36 = arith.constant 5.000000e-01 : f32
    %72 = vector.broadcast %cst_36 : f32 to vector<16x128xf32>
    %73 = arith.mulf %72, %71 : vector<16x128xf32>
    %74 = arith.mulf %71, %71 : vector<16x128xf32>
    %75 = arith.mulf %74, %71 : vector<16x128xf32>
    %cst_37 = arith.constant 4.471500e-02 : f32
    %76 = vector.broadcast %cst_37 : f32 to vector<16x128xf32>
    %77 = arith.mulf %76, %75 : vector<16x128xf32>
    %78 = arith.addf %71, %77 : vector<16x128xf32>
    %cst_38 = arith.constant 0.797884583 : f32
    %79 = vector.broadcast %cst_38 : f32 to vector<16x128xf32>
    %80 = arith.mulf %79, %78 : vector<16x128xf32>
    %81 = math.tanh %80 : vector<16x128xf32>
    %cst_39 = arith.constant 1.000000e+00 : f32
    %82 = vector.broadcast %cst_39 : f32 to vector<16x128xf32>
    %83 = arith.addf %82, %81 : vector<16x128xf32>
    %84 = arith.mulf %73, %83 : vector<16x128xf32>
    %85 = vector.broadcast %7 : vector<1x128xf32> to vector<16x128xf32>
    %86 = arith.mulf %84, %85 : vector<16x128xf32>
    %87 = vector.broadcast %8 : vector<1x128xf32> to vector<16x128xf32>
    %88 = arith.addf %86, %87 : vector<16x128xf32>
    %c0_40 = arith.constant 0 : index
    %c0_41 = arith.constant 0 : index
    %89 = vector.load %arg4[%c0_40, %c0_41] : memref<64x128xbf16, #tpu.memory_space<vmem>>, vector<64x128xbf16>
    %cst_42 = arith.constant dense<0.000000e+00> : vector<16x128xf32>
    %90 = tpu.matmul %1, %89, %cst_42 {dimension_numbers = #tpu.dot_dimension_numbers<[1], [0], [0], [1], [0, 0, 1, 1], [], []>} : vector<16x64xbf16>, vector<64x128xbf16>, vector<16x128xf32> -> vector<16x128xf32>
    %91 = vector.broadcast %9 : vector<1x128xf32> to vector<16x128xf32>
    %92 = arith.mulf %90, %91 : vector<16x128xf32>
    %93 = vector.broadcast %10 : vector<1x128xf32> to vector<16x128xf32>
    %94 = arith.addf %92, %93 : vector<16x128xf32>
    %cst_43 = arith.constant dense<0.000000e+00> : vector<128xf32>
    %95 = vector.multi_reduction <add>, %94, %cst_43 [0] : vector<16x128xf32> to vector<128xf32>
    %96 = vector.shape_cast %95 : vector<128xf32> to vector<1x128xf32>
    %c0_44 = arith.constant 0 : index
    %c0_45 = arith.constant 0 : index
    %97 = vector.load %arg5[%c0_44, %c0_45] : memref<128x8xf32, #tpu.memory_space<vmem>>, vector<128x8xf32>
    %cst_46 = arith.constant dense<0.000000e+00> : vector<1x8xf32>
    %98 = tpu.matmul %96, %97, %cst_46 {dimension_numbers = #tpu.dot_dimension_numbers<[1], [0], [0], [1], [0, 0, 1, 1], [], []>} : vector<1x128xf32>, vector<128x8xf32>, vector<1x8xf32> -> vector<1x8xf32>
    %cst_47 = arith.constant 3.906250e-03 : f32
    %99 = vector.broadcast %cst_47 : f32 to vector<1x8xf32>
    %100 = arith.mulf %98, %99 : vector<1x8xf32>
    %c0_48 = arith.constant 0 : index
    %c0_49 = arith.constant 0 : index
    %101 = vector.load %arg6[%c0_48, %c0_49] : memref<8x16xf32, #tpu.memory_space<vmem>>, vector<8x16xf32>
    %cst_50 = arith.constant dense<0.000000e+00> : vector<1x16xf32>
    %102 = tpu.matmul %100, %101, %cst_50 {dimension_numbers = #tpu.dot_dimension_numbers<[1], [0], [0], [1], [0, 0, 1, 1], [], []>} : vector<1x8xf32>, vector<8x16xf32>, vector<1x16xf32> -> vector<1x16xf32>
    %c0_51 = arith.constant 0 : index
    %c0_52 = arith.constant 0 : index
    %103 = vector.load %arg10[%c0_51, %c0_52] : memref<1x16xf32, #tpu.memory_space<vmem>>, vector<1x16xf32>
    %104 = arith.addf %102, %103 : vector<1x16xf32>
    %105 = arith.negf %104 : vector<1x16xf32>
    %106 = math.exp %105 : vector<1x16xf32>
    %cst_53 = arith.constant 1.000000e+00 : f32
    %107 = vector.broadcast %cst_53 : f32 to vector<1x16xf32>
    %108 = arith.addf %107, %106 : vector<1x16xf32>
    %109 = arith.divf %107, %108 : vector<1x16xf32>
    %110 = arith.mulf %104, %109 : vector<1x16xf32>
    %c0_54 = arith.constant 0 : index
    %c0_55 = arith.constant 0 : index
    %111 = vector.load %arg7[%c0_54, %c0_55] : memref<16x8xf32, #tpu.memory_space<vmem>>, vector<16x8xf32>
    %cst_56 = arith.constant dense<0.000000e+00> : vector<1x8xf32>
    %112 = tpu.matmul %110, %111, %cst_56 {dimension_numbers = #tpu.dot_dimension_numbers<[1], [0], [0], [1], [0, 0, 1, 1], [], []>} : vector<1x16xf32>, vector<16x8xf32>, vector<1x8xf32> -> vector<1x8xf32>
    %c0_57 = arith.constant 0 : index
    %c0_58 = arith.constant 0 : index
    %113 = vector.load %arg11[%c0_57, %c0_58] : memref<1x8xf32, #tpu.memory_space<vmem>>, vector<1x8xf32>
    %114 = arith.addf %112, %113 : vector<1x8xf32>
    %115 = arith.negf %114 : vector<1x8xf32>
    %116 = math.exp %115 : vector<1x8xf32>
    %cst_59 = arith.constant 1.000000e+00 : f32
    %117 = vector.broadcast %cst_59 : f32 to vector<1x8xf32>
    %118 = arith.addf %117, %116 : vector<1x8xf32>
    %119 = arith.divf %117, %118 : vector<1x8xf32>
    %c0_60 = arith.constant 0 : index
    %c0_61 = arith.constant 0 : index
    %120 = vector.load %arg8[%c0_60, %c0_61] : memref<8x128xf32, #tpu.memory_space<vmem>>, vector<8x128xf32>
    %cst_62 = arith.constant dense<0.000000e+00> : vector<1x128xf32>
    %121 = tpu.matmul %119, %120, %cst_62 {dimension_numbers = #tpu.dot_dimension_numbers<[1], [0], [0], [1], [0, 0, 1, 1], [], []>} : vector<1x8xf32>, vector<8x128xf32>, vector<1x128xf32> -> vector<1x128xf32>
    %122 = vector.broadcast %121 : vector<1x128xf32> to vector<16x128xf32>
    %123 = arith.mulf %94, %122 : vector<16x128xf32>
    %124 = arith.addf %88, %123 : vector<16x128xf32>
    %cst_63 = arith.constant 0.000000e+00 : f32
    %125 = vector.broadcast %cst_63 : f32 to vector<16x128xf32>
    %126 = arith.maximumf %124, %125 : vector<16x128xf32>
    %127 = vector.shape_cast %126 : vector<16x128xf32> to vector<1x16x128xf32>
    %c0_64 = arith.constant 0 : index
    %c0_65 = arith.constant 0 : index
    %c0_66 = arith.constant 0 : index
    %128 = vector.load %arg12[%c0_64, %c0_65, %c0_66] : memref<1x16x128xf32, #tpu.memory_space<vmem>>, vector<1x16x128xf32>
    tpu.vector_store %arg12[%c0_64, %c0_65, %c0_66], %127 {strides = array<i32>} : memref<1x16x128xf32, #tpu.memory_space<vmem>>, vector<1x16x128xf32>,
    return
  }
  func.func @transform_0(%arg0: i32) -> (i32, i32, i32) {
    %c0_i32 = arith.constant 0 : i32
    %c0_i32_0 = arith.constant 0 : i32
    %c0_i32_1 = arith.constant 0 : i32
    return %arg0, %c0_i32, %c0_i32_0 : i32, i32, i32
  }
  func.func @transform_1(%arg0: i32) -> (i32, i32, i32) {
    %c0_i32 = arith.constant 0 : i32
    %c0_i32_0 = arith.constant 0 : i32
    %c0_i32_1 = arith.constant 0 : i32
    %c0_i32_2 = arith.constant 0 : i32
    return %c0_i32, %c0_i32_0, %c0_i32_1 : i32, i32, i32
  }
  func.func @transform_2(%arg0: i32) -> (i32, i32, i32) {
    %c0_i32 = arith.constant 0 : i32
    %c0_i32_0 = arith.constant 0 : i32
    %c0_i32_1 = arith.constant 0 : i32
    %c0_i32_2 = arith.constant 0 : i32
    return %c0_i32, %c0_i32_0, %c0_i32_1 : i32, i32, i32
  }
  func.func @transform_3(%arg0: i32) -> (i32, i32) {
    %c0_i32 = arith.constant 0 : i32
    %c0_i32_0 = arith.constant 0 : i32
    %c0_i32_1 = arith.constant 0 : i32
    return %c0_i32, %c0_i32_0 : i32, i32
  }
  func.func @transform_4(%arg0: i32) -> (i32, i32) {
    %c0_i32 = arith.constant 0 : i32
    %c0_i32_0 = arith.constant 0 : i32
    %c0_i32_1 = arith.constant 0 : i32
    return %c0_i32, %c0_i32_0 : i32, i32
  }
  func.func @transform_5(%arg0: i32) -> (i32, i32) {
    %c0_i32 = arith.constant 0 : i32
    %c0_i32_0 = arith.constant 0 : i32
    %c0_i32_1 = arith.constant 0 : i32
    return %c0_i32, %c0_i32_0 : i32, i32
  }
  func.func @transform_6(%arg0: i32) -> (i32, i32) {
    %c0_i32 = arith.constant 0 : i32
    %c0_i32_0 = arith.constant 0 : i32
    %c0_i32_1 = arith.constant 0 : i32
    return %c0_i32, %c0_i32_0 : i32, i32
  }
  func.func @transform_7(%arg0: i32) -> (i32, i32) {
    %c0_i32 = arith.constant 0 : i32
    %c0_i32_0 = arith.constant 0 : i32
    %c0_i32_1 = arith.constant 0 : i32
    return %c0_i32, %c0_i32_0 : i32, i32
  }
  func.func @transform_8(%arg0: i32) -> (i32, i32) {
    %c0_i32 = arith.constant 0 : i32
    %c0_i32_0 = arith.constant 0 : i32
    %c0_i32_1 = arith.constant 0 : i32
    return %c0_i32, %c0_i32_0 : i32, i32
  }
  func.func @transform_9(%arg0: i32) -> (i32, i32) {
    %c0_i32 = arith.constant 0 : i32
    %c0_i32_0 = arith.constant 0 : i32
    %c0_i32_1 = arith.constant 0 : i32
    return %c0_i32, %c0_i32_0 : i32, i32
  }
  func.func @transform_10(%arg0: i32) -> (i32, i32) {
    %c0_i32 = arith.constant 0 : i32
    %c0_i32_0 = arith.constant 0 : i32
    %c0_i32_1 = arith.constant 0 : i32
    return %c0_i32, %c0_i32_0 : i32, i32
  }
  func.func @transform_11(%arg0: i32) -> (i32, i32, i32) {
    %c0_i32 = arith.constant 0 : i32
    %c0_i32_0 = arith.constant 0 : i32
    %c0_i32_1 = arith.constant 0 : i32
    return %arg0, %c0_i32, %c0_i32_0 : i32, i32, i32
  }
}

</mosaic_0001>

<llo_original>
// kernel: tpu_custom_call.1
$region0: #{tpu_custom_call.1}
  #allocation0 [shape = 'u32[]', space=smem, size = 0x4, offset = 0x4, fixed_abs, tag = 'smem constant byte address 0x4 - core index']
  #allocation1 [shape = 'u32[144,128]{1,0:T(1,128)}', space=vmem, size = 0x12000, scoped, tag = 'internal scratch']
  %s0 = inlined_call_operand.vmem [shape: bf16[2,16,64], index: 0, kind: input, shape index: {}]
  %s1 = inlined_call_operand.vmem [shape: bf16[3,64,128], index: 1, kind: input, shape index: {}]
  %s2 = inlined_call_operand.hbm [shape: bf16[3,128,128], index: 2, kind: input, shape index: {}]
  %s3 = inlined_call_operand.vmem [shape: bf16[64,128], index: 3, kind: input, shape index: {}]
  %s4 = inlined_call_operand.vmem [shape: f32[128,8], index: 4, kind: input, shape index: {}]
  %s5 = inlined_call_operand.vmem [shape: f32[8,16], index: 5, kind: input, shape index: {}]
  %s6 = inlined_call_operand.vmem [shape: f32[16,8], index: 6, kind: input, shape index: {}]
  %s7 = inlined_call_operand.vmem [shape: f32[8,128], index: 7, kind: input, shape index: {}]
  %s8 = inlined_call_operand.vmem [shape: f32[8,128], index: 8, kind: input, shape index: {}]
  %s9 = inlined_call_operand.vmem [shape: f32[1,16], index: 9, kind: input, shape index: {}]
  %s10 = inlined_call_operand.vmem [shape: f32[1,8], index: 10, kind: input, shape index: {}]
  %s11 = inlined_call_operand.hbm [shape: f32[2,16,128], index: 11, kind: output, shape index: {}]
  %s12 = sld [smem:[#allocation0]]
  $region81: #{tpu_custom_call.1} parent=0
    _
  %s14 = ssub.s32 1, %s12
  %s15 = scalar_select 0, %s14, %s12
  $region1: #{tpu_custom_call.1} parent=0
    #allocation2 [shape = 'u8[98304]{0}', space=vmem, size = 0x18000, scoped, tag = 'input window, operand 2, single buffered']
    #allocation3 [shape = 's32[2]{0}', space=sflag, size = 0x8, scoped, tag = 'scoped memory for tpu_custom_call.1']
    #allocation4 [shape = 's32[2]{0}', space=sflag, size = 0x8, scoped, tag = 'scoped memory for tpu_custom_call.1']
    #allocation5 [shape = 'u8[16384]{0}', space=vmem, size = 0x4000, scoped, tag = 'output window, operand 0']
    %16 = vsyncpa [#allocation3], 0
    %17 = vsyncpa [#allocation4], 0
    %s18 = scalar_lea.sflag [#allocation4], 1
    %19 = vsyncpa %s18, 0
    loop: start=0, step=1, limit=4
    $region2: #{tpu_custom_call.1} parent=1 // loop_pre_header
      _
    $region3: #{tpu_custom_call.1} parent=1 // loop_header
      %s21 = sphi 0, %s25
      %p22 = scmp.ge.s32.totalorder %s21, 4
      %s31 = sphi 0, %s33
      %s34 = sphi 0, %s31
      %s35 = sphi 0, %s34
      %s51 = sphi 0, %s35
      %s55 = sphi 0, %s55
      %s57 = sphi 0, %s55
      %s58 = sphi 0, %s57
      %s72 = sphi 0, %s58
      %s76 = sphi 0, %s76
      %s78 = sphi 0, %s76
      %s79 = sphi 0, %s78
      %s93 = sphi 0, %s79
      %s97 = sphi 0, %s97
      %s99 = sphi 0, %s97
      %s100 = sphi 0, %s99
      %s114 = sphi 0, %s100
      %s118 = sphi 0, %s118
      %s120 = sphi 0, %s118
      %s121 = sphi 0, %s120
      %s135 = sphi 0, %s121
      %s139 = sphi 0, %s139
      %s141 = sphi 0, %s139
      %s142 = sphi 0, %s141
      %s156 = sphi 0, %s142
      %s160 = sphi 0, %s160
      %s162 = sphi 0, %s160
      %s163 = sphi 0, %s162
      %s177 = sphi 0, %s163
      %s181 = sphi 0, %s181
      %s183 = sphi 0, %s181
      %s184 = sphi 0, %s183
      %s198 = sphi 0, %s184
      %s202 = sphi 0, %s202
      %s204 = sphi 0, %s202
      %s205 = sphi 0, %s204
      %s219 = sphi 0, %s205
      %s223 = sphi 0, %s223
      %s225 = sphi 0, %s223
      %s226 = sphi 0, %s225
      %s240 = sphi 0, %s226
      %s244 = sphi 0, %s244
      %s246 = sphi 0, %s244
      %s247 = sphi 0, %s246
      %s261 = sphi 0, %s247
      %s267 = sphi 0, %s269
      %s270 = sphi 0, %s267
      %s271 = sphi 0, %s270
      %s287 = sphi 0, %s271
    $region4: #{tpu_custom_call.1} parent=1 // loop_header_branch
      %24 = sbr.rel (%p22) target = $region8
    $region5: #{tpu_custom_call.1} parent=1 // loop_body
      %s26 = ssub.s32 %s21, 1
      %s27 = ssub.s32 %s21, 2
      %s28 = sadd.s32 %s21, 1
      %s29 = ssub.s32 %s21, %s28
      %p30 = scmp.eq.s32.totalorder %s29, 0
      %s32 = sadd.s32 %s31, 1
      %s33 = scalar_select %p30, %s31, %s32
      %p36 = pneg %p30
      %p37 = scmp.eq.s32.totalorder %s21, 1
      %p38 = por %p36, %p37
      %p39 = scmp.ne.s32.totalorder %s31, %s34
      %p40 = scmp.eq.s32.totalorder %s21, 0
      %p41 = por %p39, %p40
      %p42 = scmp.ne.s32.totalorder %s31, %s34
      %p43 = scmp.eq.s32.totalorder %s26, 1
      %p44 = por %p42, %p43
      %p45 = scmp.ne.s32.totalorder %s34, %s35
      %p46 = scmp.eq.s32.totalorder %s26, 0
      %p47 = por %p45, %p46
      %p48 = scmp.ne.s32.totalorder %s34, %s35
      %p49 = scmp.eq.s32.totalorder %s27, 1
      %p50 = por %p48, %p49
      %p52 = scmp.ne.s32.totalorder %s35, %s51
      %p53 = scmp.eq.s32.totalorder %s27, 0
      %p54 = por %p52, %p53
      %s56 = sadd.s32 %s55, 1
      %p59 = scmp.eq.s32.totalorder %s21, 1
      %p60 = scmp.ne.s32.totalorder %s55, %s57
      %p61 = scmp.eq.s32.totalorder %s21, 0
      %p62 = por %p60, %p61
      %p63 = scmp.ne.s32.totalorder %s55, %s57
      %p64 = scmp.eq.s32.totalorder %s26, 1
      %p65 = por %p63, %p64
      %p66 = scmp.ne.s32.totalorder %s57, %s58
      %p67 = scmp.eq.s32.totalorder %s26, 0
      %p68 = por %p66, %p67
      %p69 = scmp.ne.s32.totalorder %s57, %s58
      %p70 = scmp.eq.s32.totalorder %s27, 1
      %p71 = por %p69, %p70
      %p73 = scmp.ne.s32.totalorder %s58, %s72
      %p74 = scmp.eq.s32.totalorder %s27, 0
      %p75 = por %p73, %p74
      %s77 = sadd.s32 %s76, 1
      %p80 = scmp.eq.s32.totalorder %s21, 1
      %p81 = scmp.ne.s32.totalorder %s76, %s78
      %p82 = scmp.eq.s32.totalorder %s21, 0
      %p83 = por %p81, %p82
      %p84 = scmp.ne.s32.totalorder %s76, %s78
      %p85 = scmp.eq.s32.totalorder %s26, 1
      %p86 = por %p84, %p85
      %p87 = scmp.ne.s32.totalorder %s78, %s79
      %p88 = scmp.eq.s32.totalorder %s26, 0
      %p89 = por %p87, %p88
      %p90 = scmp.ne.s32.totalorder %s78, %s79
      %p91 = scmp.eq.s32.totalorder %s27, 1
      %p92 = por %p90, %p91
      %p94 = scmp.ne.s32.totalorder %s79, %s93
      %p95 = scmp.eq.s32.totalorder %s27, 0
      %p96 = por %p94, %p95
      %s98 = sadd.s32 %s97, 1
      %p101 = scmp.eq.s32.totalorder %s21, 1
      %p102 = scmp.ne.s32.totalorder %s97, %s99
      %p103 = scmp.eq.s32.totalorder %s21, 0
      %p104 = por %p102, %p103
      %p105 = scmp.ne.s32.totalorder %s97, %s99
      %p106 = scmp.eq.s32.totalorder %s26, 1
      %p107 = por %p105, %p106
      %p108 = scmp.ne.s32.totalorder %s99, %s100
      %p109 = scmp.eq.s32.totalorder %s26, 0
      %p110 = por %p108, %p109
      %p111 = scmp.ne.s32.totalorder %s99, %s100
      %p112 = scmp.eq.s32.totalorder %s27, 1
      %p113 = por %p111, %p112
      %p115 = scmp.ne.s32.totalorder %s100, %s114
      %p116 = scmp.eq.s32.totalorder %s27, 0
      %p117 = por %p115, %p116
      %s119 = sadd.s32 %s118, 1
      %p122 = scmp.eq.s32.totalorder %s21, 1
      %p123 = scmp.ne.s32.totalorder %s118, %s120
      %p124 = scmp.eq.s32.totalorder %s21, 0
      %p125 = por %p123, %p124
      %p126 = scmp.ne.s32.totalorder %s118, %s120
      %p127 = scmp.eq.s32.totalorder %s26, 1
      %p128 = por %p126, %p127
      %p129 = scmp.ne.s32.totalorder %s120, %s121
      %p130 = scmp.eq.s32.totalorder %s26, 0
      %p131 = por %p129, %p130
      %p132 = scmp.ne.s32.totalorder %s120, %s121
      %p133 = scmp.eq.s32.totalorder %s27, 1
      %p134 = por %p132, %p133
      %p136 = scmp.ne.s32.totalorder %s121, %s135
      %p137 = scmp.eq.s32.totalorder %s27, 0
      %p138 = por %p136, %p137
      %s140 = sadd.s32 %s139, 1
      %p143 = scmp.eq.s32.totalorder %s21, 1
      %p144 = scmp.ne.s32.totalorder %s139, %s141
      %p145 = scmp.eq.s32.totalorder %s21, 0
      %p146 = por %p144, %p145
      %p147 = scmp.ne.s32.totalorder %s139, %s141
      %p148 = scmp.eq.s32.totalorder %s26, 1
      %p149 = por %p147, %p148
      %p150 = scmp.ne.s32.totalorder %s141, %s142
      %p151 = scmp.eq.s32.totalorder %s26, 0
      %p152 = por %p150, %p151
      %p153 = scmp.ne.s32.totalorder %s141, %s142
      %p154 = scmp.eq.s32.totalorder %s27, 1
      %p155 = por %p153, %p154
      %p157 = scmp.ne.s32.totalorder %s142, %s156
      %p158 = scmp.eq.s32.totalorder %s27, 0
      %p159 = por %p157, %p158
      %s161 = sadd.s32 %s160, 1
      %p164 = scmp.eq.s32.totalorder %s21, 1
      %p165 = scmp.ne.s32.totalorder %s160, %s162
      %p166 = scmp.eq.s32.totalorder %s21, 0
      %p167 = por %p165, %p166
      %p168 = scmp.ne.s32.totalorder %s160, %s162
      %p169 = scmp.eq.s32.totalorder %s26, 1
      %p170 = por %p168, %p169
      %p171 = scmp.ne.s32.totalorder %s162, %s163
      %p172 = scmp.eq.s32.totalorder %s26, 0
      %p173 = por %p171, %p172
      %p174 = scmp.ne.s32.totalorder %s162, %s163
      %p175 = scmp.eq.s32.totalorder %s27, 1
      %p176 = por %p174, %p175
      %p178 = scmp.ne.s32.totalorder %s163, %s177
      %p179 = scmp.eq.s32.totalorder %s27, 0
      %p180 = por %p178, %p179
      %s182 = sadd.s32 %s181, 1
      %p185 = scmp.eq.s32.totalorder %s21, 1
      %p186 = scmp.ne.s32.totalorder %s181, %s183
      %p187 = scmp.eq.s32.totalorder %s21, 0
      %p188 = por %p186, %p187
      %p189 = scmp.ne.s32.totalorder %s181, %s183
      %p190 = scmp.eq.s32.totalorder %s26, 1
      %p191 = por %p189, %p190
      %p192 = scmp.ne.s32.totalorder %s183, %s184
      %p193 = scmp.eq.s32.totalorder %s26, 0
      %p194 = por %p192, %p193
      %p195 = scmp.ne.s32.totalorder %s183, %s184
      %p196 = scmp.eq.s32.totalorder %s27, 1
      %p197 = por %p195, %p196
      %p199 = scmp.ne.s32.totalorder %s184, %s198
      %p200 = scmp.eq.s32.totalorder %s27, 0
      %p201 = por %p199, %p200
      %s203 = sadd.s32 %s202, 1
      %p206 = scmp.eq.s32.totalorder %s21, 1
      %p207 = scmp.ne.s32.totalorder %s202, %s204
      %p208 = scmp.eq.s32.totalorder %s21, 0
      %p209 = por %p207, %p208
      %p210 = scmp.ne.s32.totalorder %s202, %s204
      %p211 = scmp.eq.s32.totalorder %s26, 1
      %p212 = por %p210, %p211
      %p213 = scmp.ne.s32.totalorder %s204, %s205
      %p214 = scmp.eq.s32.totalorder %s26, 0
      %p215 = por %p213, %p214
      %p216 = scmp.ne.s32.totalorder %s204, %s205
      %p217 = scmp.eq.s32.totalorder %s27, 1
      %p218 = por %p216, %p217
      %p220 = scmp.ne.s32.totalorder %s205, %s219
      %p221 = scmp.eq.s32.totalorder %s27, 0
      %p222 = por %p220, %p221
      %s224 = sadd.s32 %s223, 1
      %p227 = scmp.eq.s32.totalorder %s21, 1
      %p228 = scmp.ne.s32.totalorder %s223, %s225
      %p229 = scmp.eq.s32.totalorder %s21, 0
      %p230 = por %p228, %p229
      %p231 = scmp.ne.s32.totalorder %s223, %s225
      %p232 = scmp.eq.s32.totalorder %s26, 1
      %p233 = por %p231, %p232
      %p234 = scmp.ne.s32.totalorder %s225, %s226
      %p235 = scmp.eq.s32.totalorder %s26, 0
      %p236 = por %p234, %p235
      %p237 = scmp.ne.s32.totalorder %s225, %s226
      %p238 = scmp.eq.s32.totalorder %s27, 1
      %p239 = por %p237, %p238
      %p241 = scmp.ne.s32.totalorder %s226, %s240
      %p242 = scmp.eq.s32.totalorder %s27, 0
      %p243 = por %p241, %p242
      %s245 = sadd.s32 %s244, 1
      %p248 = scmp.eq.s32.totalorder %s21, 1
      %p249 = scmp.ne.s32.totalorder %s244, %s246
      %p250 = scmp.eq.s32.totalorder %s21, 0
      %p251 = por %p249, %p250
      %p252 = scmp.ne.s32.totalorder %s244, %s246
      %p253 = scmp.eq.s32.totalorder %s26, 1
      %p254 = por %p252, %p253
      %p255 = scmp.ne.s32.totalorder %s246, %s247
      %p256 = scmp.eq.s32.totalorder %s26, 0
      %p257 = por %p255, %p256
      %p258 = scmp.ne.s32.totalorder %s246, %s247
      %p259 = scmp.eq.s32.totalorder %s27, 1
      %p260 = por %p258, %p259
      %p262 = scmp.ne.s32.totalorder %s247, %s261
      %p263 = scmp.eq.s32.totalorder %s27, 0
      %p264 = por %p262, %p263
      %s265 = ssub.s32 %s21, %s28
      %p266 = scmp.eq.s32.totalorder %s265, 0
      %s268 = sadd.s32 %s267, 1
      %s269 = scalar_select %p266, %s267, %s268
      %p272 = pneg %p266
      %p273 = scmp.eq.s32.totalorder %s21, 1
      %p274 = por %p272, %p273
      %p275 = scmp.ne.s32.totalorder %s267, %s270
      %p276 = scmp.eq.s32.totalorder %s21, 0
      %p277 = por %p275, %p276
      %p278 = scmp.ne.s32.totalorder %s267, %s270
      %p279 = scmp.eq.s32.totalorder %s26, 1
      %p280 = por %p278, %p279
      %p281 = scmp.ne.s32.totalorder %s270, %s271
      %p282 = scmp.eq.s32.totalorder %s26, 0
      %p283 = por %p281, %p282
      %p284 = scmp.ne.s32.totalorder %s270, %s271
      %p285 = scmp.eq.s32.totalorder %s27, 1
      %p286 = por %p284, %p285
      %p288 = scmp.ne.s32.totalorder %s271, %s287
      %p289 = scmp.eq.s32.totalorder %s27, 0
      %p290 = por %p288, %p289
      %p291 = scmp.le.s32.totalorder 1, %s21
      %p292 = scmp.lt.s32.totalorder %s21, 3
      %p293 = pnand %p291, %p292
      %p294 = pneg %p293
      // Predicated region
      $region9: #{tpu_custom_call.1} parent=5 // pred_check
        _
      $region10: #{tpu_custom_call.1} parent=5 // pred_check_branch
        %296 = sbr.rel (%p293) target = $region12
      $region11: #{tpu_custom_call.1} parent=5 // pred_region
        %s297 = ssub.s32 %s21, 1
        // Predicated region
        $region13: #{tpu_custom_call.1} parent=11 // pred_check
          %p298 = pneg %p68
        $region14: #{tpu_custom_call.1} parent=11 // pred_check_branch
          %300 = sbr.rel (%p298) target = $region16
        $region15: #{tpu_custom_call.1} parent=11 // pred_region
          _
        $region16: #{tpu_custom_call.1} parent=11 // pred_fallthru
          _
        // Predicated region
        $region17: #{tpu_custom_call.1} parent=11 // pred_check
          %p301 = pneg %p89
        $region18: #{tpu_custom_call.1} parent=11 // pred_check_branch
          %303 = sbr.rel (%p301) target = $region20
        $region19: #{tpu_custom_call.1} parent=11 // pred_region
          %s305 = ssub.s32 3072, 3072
          %306 = vsyncadd [#allocation3], %s305
          %s307 = sshll.u32 [#allocation2], 4
          %s308 = int_to_ptr.vmem [resolvable:$true] %s307
          %313 = dma.hbm_to_vmem [thread:$0]  %s2, 3072, %s308, [#allocation3], 64, 64, 4
        $region20: #{tpu_custom_call.1} parent=11 // pred_fallthru
          _
        // Predicated region
        $region21: #{tpu_custom_call.1} parent=11 // pred_check
          %p314 = pneg %p110
        $region22: #{tpu_custom_call.1} parent=11 // pred_check_branch
          %316 = sbr.rel (%p314) target = $region24
        $region23: #{tpu_custom_call.1} parent=11 // pred_region
          _
        $region24: #{tpu_custom_call.1} parent=11 // pred_fallthru
          _
        // Predicated region
        $region25: #{tpu_custom_call.1} parent=11 // pred_check
          %p317 = pneg %p131
        $region26: #{tpu_custom_call.1} parent=11 // pred_check_branch
          %319 = sbr.rel (%p317) target = $region28
        $region27: #{tpu_custom_call.1} parent=11 // pred_region
          _
        $region28: #{tpu_custom_call.1} parent=11 // pred_fallthru
          _
        // Predicated region
        $region29: #{tpu_custom_call.1} parent=11 // pred_check
          %p320 = pneg %p152
        $region30: #{tpu_custom_call.1} parent=11 // pred_check_branch
          %322 = sbr.rel (%p320) target = $region32
        $region31: #{tpu_custom_call.1} parent=11 // pred_region
          _
        $region32: #{tpu_custom_call.1} parent=11 // pred_fallthru
          _
        // Predicated region
        $region33: #{tpu_custom_call.1} parent=11 // pred_check
          %p323 = pneg %p173
        $region34: #{tpu_custom_call.1} parent=11 // pred_check_branch
          %325 = sbr.rel (%p323) target = $region36
        $region35: #{tpu_custom_call.1} parent=11 // pred_region
          _
        $region36: #{tpu_custom_call.1} parent=11 // pred_fallthru
          _
        // Predicated region
        $region37: #{tpu_custom_call.1} parent=11 // pred_check
          %p326 = pneg %p194
        $region38: #{tpu_custom_call.1} parent=11 // pred_check_branch
          %328 = sbr.rel (%p326) target = $region40
        $region39: #{tpu_custom_call.1} parent=11 // pred_region
          _
        $region40: #{tpu_custom_call.1} parent=11 // pred_fallthru
          _
        // Predicated region
        $region41: #{tpu_custom_call.1} parent=11 // pred_check
          %p329 = pneg %p215
        $region42: #{tpu_custom_call.1} parent=11 // pred_check_branch
          %331 = sbr.rel (%p329) target = $region44
        $region43: #{tpu_custom_call.1} parent=11 // pred_region
          _
        $region44: #{tpu_custom_call.1} parent=11 // pred_fallthru
          _
        // Predicated region
        $region45: #{tpu_custom_call.1} parent=11 // pred_check
          %p332 = pneg %p236
        $region46: #{tpu_custom_call.1} parent=11 // pred_check_branch
          %334 = sbr.rel (%p332) target = $region48
        $region47: #{tpu_custom_call.1} parent=11 // pred_region
          _
        $region48: #{tpu_custom_call.1} parent=11 // pred_fallthru
          _
        // Predicated region
        $region49: #{tpu_custom_call.1} parent=11 // pred_check
          %p335 = pneg %p257
        $region50: #{tpu_custom_call.1} parent=11 // pred_check_branch
          %337 = sbr.rel (%p335) target = $region52
        $region51: #{tpu_custom_call.1} parent=11 // pred_region
          _
        $region52: #{tpu_custom_call.1} parent=11 // pred_fallthru
          _
      $region12: #{tpu_custom_call.1} parent=5 // pred_fallthru
        _
      %p338 = scmp.lt.s32.totalorder %s21, 2
      // Predicated region
      $region53: #{tpu_custom_call.1} parent=5 // pred_check
        %p339 = pneg %p338
      $region54: #{tpu_custom_call.1} parent=5 // pred_check_branch
        %341 = sbr.rel (%p339) target = $region56
      $region55: #{tpu_custom_call.1} parent=5 // pred_region
        // Predicated region
        $region57: #{tpu_custom_call.1} parent=55 // pred_check
          %p342 = pneg %p41
        $region58: #{tpu_custom_call.1} parent=55 // pred_check_branch
          %344 = sbr.rel (%p342) target = $region60
        $region59: #{tpu_custom_call.1} parent=55 // pred_region
          %p345 = scmp.lt.s32.totalorder %s21, 1
          %s346 = scalar_select %p345, %s21, 1
          %s347 = smul.addr %s346, 2
          %s348 = smul.addr %s347, 4
          %s349 = scalar_lea.vmem %s0, %s348
        $region60: #{tpu_custom_call.1} parent=55 // pred_fallthru
          _
      $region56: #{tpu_custom_call.1} parent=5 // pred_fallthru
        _
      %p350 = scmp.le.s32.totalorder 1, %s21
      %p351 = scmp.lt.s32.totalorder %s21, 3
      %p352 = pnand %p350, %p351
      %p353 = pneg %p352
      // Predicated region
      $region61: #{tpu_custom_call.1} parent=5 // pred_check
        _
      $region62: #{tpu_custom_call.1} parent=5 // pred_check_branch
        %355 = sbr.rel (%p352) target = $region64
      $region63: #{tpu_custom_call.1} parent=5 // pred_region
        %s356 = ssub.s32 %s21, 1
        // Predicated region
        $region65: #{tpu_custom_call.1} parent=63 // pred_check
          %p357 = pneg %p89
        $region66: #{tpu_custom_call.1} parent=63 // pred_check_branch
          %359 = sbr.rel (%p357) target = $region68
        $region67: #{tpu_custom_call.1} parent=63 // pred_region
          %360 = dma.done [#allocation3], 3072
        $region68: #{tpu_custom_call.1} parent=63 // pred_fallthru
          _
        %p361 = scmp.lt.s32.totalorder %s26, 1
        %s362 = scalar_select %p361, %s26, 1
        %s363 = smul.addr %s362, 2
        %s364 = smul.addr %s363, 4
        %s365 = scalar_lea.vmem %s0, %s364
        %p366 = pneg %p47
        %p367 = pneg %p44
        %p368 = pneg %p68
        %p369 = pneg %p65
        %p370 = pneg %p89
        %p371 = pneg %p86
        %p372 = pneg %p110
        %p373 = pneg %p107
        %p374 = pneg %p131
        %p375 = pneg %p128
        %p376 = pneg %p152
        %p377 = pneg %p149
        %p378 = pneg %p173
        %p379 = pneg %p170
        %p380 = pneg %p194
        %p381 = pneg %p191
        %p382 = pneg %p215
        %p383 = pneg %p212
        %p384 = pneg %p236
        %p385 = pneg %p233
        %p386 = pneg %p257
        %p387 = pneg %p254
        %p388 = pneg %p283
        %p389 = pneg %p280
        %s390 = sand.u32 %s270, 1
        %s391 = scalar_lea.sflag [#allocation4], %s390
        %s392 = sand.u32 %s270, 1
        %s393 = smul.addr %s392, 16
        %s394 = scalar_lea.vmem [#allocation5], %s393
        %p395 = scmp.lt.s32.totalorder %s26, 1
        %s396 = scalar_select %p395, %s26, 1
        %s397 = smul.addr %s396, 2
        %s398 = smul.addr %s397, 4
        %s399 = scalar_lea.vmem %s0, %s398
        %v401 = vld [vmem:[%s399] sm:$0xf]
        %v402 = vld [vmem:[%s399 + $0x4] sm:$0xf]
        %v403 = vld [vmem:[%s8] sm:$0xff]
        %v404 = vlaneseq
        %v405 = vshrl.u32 %v404, 7
        %v406 = vadd.s32 %v405, 8
        %vm407 = vcmp.eq.s32.totalorder %v405, 0
        %vm408 = vcmp.eq.s32.totalorder %v406, 0
        %vm409 = vcmp.eq.s32.totalorder %v405, 15
        %vm410 = vcmp.eq.s32.totalorder %v406, 15
        %v411 = vld [vmem:[%s1] sm:$0xf]
        %v412 = vld [vmem:[%s1 + $0x4] sm:$0xf]
        %v413 = vld [vmem:[%s1 + $0x8] sm:$0xf]
        %v414 = vld [vmem:[%s1 + $0xc] sm:$0xf]
        %v415 = vld [vmem:[%s1 + $0x10] sm:$0xf]
        %v416 = vld [vmem:[%s1 + $0x14] sm:$0xf]
        %v417 = vld [vmem:[%s1 + $0x18] sm:$0xf]
        %v418 = vld [vmem:[%s1 + $0x1c] sm:$0xf]
        %v421 = vunpack.c.l.b16 %v401
        %v422 = vunpack.c.l.b16 %v402
        %v423 = vpack.c.b16 %v422, %v421
        %v432 = vunpack.c.l.b16 %v411
        %v433 = vunpack.c.l.b16 %v412
        %v434 = vunpack.c.l.b16 %v413
        %v435 = vunpack.c.l.b16 %v414
        %v436 = vunpack.c.l.b16 %v415
        %v437 = vunpack.c.l.b16 %v416
        %v438 = vunpack.c.l.b16 %v417
        %v439 = vunpack.c.l.b16 %v418
        %v440 = vpack.c.b16 %v433, %v432
        %v441 = vpack.c.b16 %v435, %v434
        %v442 = vpack.c.b16 %v437, %v436
        %v443 = vpack.c.b16 %v439, %v438
        %vm448 = vcmask 523264
        %v450 = vsel %vm448, %v423, 0
        %452 = vmatprep.subr.bf16.mxu0 0
        %453 = vmatpush1.bf16.msra.mxu0 %v440
        %454 = vmatprep.subr.bf16.mxu0 0
        %455 = vmatpush1.bf16.msra.mxu0 %v441
        %456 = vmatprep.subr.bf16.mxu0 0
        %457 = vmatpush1.bf16.msra.mxu0 %v442
        %458 = vmatprep.subr.bf16.mxu0 0
        %459 = vmatpush1.bf16.msra.mxu0 %v443
        %460 = vmatprep.subr.bf16.mxu0 0
        %461 = vmatpush1.bf16.msra.mxu0 0
        %462 = vmatprep.subr.bf16.mxu0 0
        %463 = vmatpush1.bf16.msra.mxu0 0
        %464 = vmatprep.subr.bf16.mxu0 0
        %465 = vmatpush1.bf16.msra.mxu0 0
        %466 = vmatprep.subr.bf16.mxu0 0
        %467 = vmatpush1.bf16.msra.mxu0 0
        %468 = vmatprep.subr.bf16.mxu0 0
        %469 = vmatpush1.bf16.msra.mxu0 0
        %470 = vmatprep.subr.bf16.mxu0 0
        %471 = vmatpush1.bf16.msra.mxu0 0
        %472 = vmatprep.subr.bf16.mxu0 0
        %473 = vmatpush1.bf16.msra.mxu0 0
        %474 = vmatprep.subr.bf16.mxu0 0
        %475 = vmatpush1.bf16.msra.mxu0 0
        %476 = vmatprep.subr.bf16.mxu0 0
        %477 = vmatpush1.bf16.msra.mxu0 0
        %478 = vmatprep.subr.bf16.mxu0 0
        %479 = vmatpush1.bf16.msra.mxu0 0
        %480 = vmatprep.subr.bf16.mxu0 0
        %481 = vmatpush1.bf16.msra.mxu0 0
        %482 = vmatprep.subr.bf16.mxu0 0
        %483 = vmatpush1.bf16.msra.mxu0 0
        %484 = vmatprep.mubr.bf16.mxu0 0
        %485 = vmatmul.mubr.bf16.gmra.mrb[0].mxu0 %v450
        %v486 = vpop.f32.mrb[0].mxu0
        %v487 = vadd.f32 0.0, %v486
        %v488 = vpop.f32.mrb[0].mxu0
        %v489 = vpop.f32.mrb[0].mxu0
        %v490 = vadd.f32 0.0, %v489
        %v491 = vpop.f32.mrb[0].mxu0
        %492 = vdwg.mxu0
        %s493 = scalar_lea.vmem %s1, 32
        %v494 = vld [vmem:[%s493] sm:$0xf]
        %v495 = vld [vmem:[%s493 + $0x4] sm:$0xf]
        %v496 = vld [vmem:[%s493 + $0x8] sm:$0xf]
        %v497 = vld [vmem:[%s493 + $0xc] sm:$0xf]
        %v498 = vld [vmem:[%s493 + $0x10] sm:$0xf]
        %v499 = vld [vmem:[%s493 + $0x14] sm:$0xf]
        %v500 = vld [vmem:[%s493 + $0x18] sm:$0xf]
        %v501 = vld [vmem:[%s493 + $0x1c] sm:$0xf]
        %s502 = scalar_lea.vmem %s1, 64
        %v503 = vld [vmem:[%s502] sm:$0xf]
        %v504 = vld [vmem:[%s502 + $0x4] sm:$0xf]
        %v505 = vld [vmem:[%s502 + $0x8] sm:$0xf]
        %v506 = vld [vmem:[%s502 + $0xc] sm:$0xf]
        %v507 = vld [vmem:[%s502 + $0x10] sm:$0xf]
        %v508 = vld [vmem:[%s502 + $0x14] sm:$0xf]
        %v509 = vld [vmem:[%s502 + $0x18] sm:$0xf]
        %v510 = vld [vmem:[%s502 + $0x1c] sm:$0xf]
        %v519 = vunpack.c.l.b16 %v503
        %v520 = vunpack.c.l.b16 %v504
        %v521 = vunpack.c.l.b16 %v505
        %v522 = vunpack.c.l.b16 %v506
        %v523 = vunpack.c.l.b16 %v507
        %v524 = vunpack.c.l.b16 %v508
        %v525 = vunpack.c.l.b16 %v509
        %v526 = vunpack.c.l.b16 %v510
        %v527 = vpack.c.b16 %v520, %v519
        %v528 = vpack.c.b16 %v522, %v521
        %v529 = vpack.c.b16 %v524, %v523
        %v530 = vpack.c.b16 %v526, %v525
        %535 = vmatprep.subr.bf16.mxu0 0
        %536 = vmatpush1.bf16.msra.mxu0 %v527
        %537 = vmatprep.subr.bf16.mxu0 0
        %538 = vmatpush1.bf16.msra.mxu0 %v528
        %539 = vmatprep.subr.bf16.mxu0 0
        %540 = vmatpush1.bf16.msra.mxu0 %v529
        %541 = vmatprep.subr.bf16.mxu0 0
        %542 = vmatpush1.bf16.msra.mxu0 %v530
        %543 = vmatprep.subr.bf16.mxu0 0
        %544 = vmatpush1.bf16.msra.mxu0 0
        %545 = vmatprep.subr.bf16.mxu0 0
        %546 = vmatpush1.bf16.msra.mxu0 0
        %547 = vmatprep.subr.bf16.mxu0 0
        %548 = vmatpush1.bf16.msra.mxu0 0
        %549 = vmatprep.subr.bf16.mxu0 0
        %550 = vmatpush1.bf16.msra.mxu0 0
        %551 = vmatprep.subr.bf16.mxu0 0
        %552 = vmatpush1.bf16.msra.mxu0 0
        %553 = vmatprep.subr.bf16.mxu0 0
        %554 = vmatpush1.bf16.msra.mxu0 0
        %555 = vmatprep.subr.bf16.mxu0 0
        %556 = vmatpush1.bf16.msra.mxu0 0
        %557 = vmatprep.subr.bf16.mxu0 0
        %558 = vmatpush1.bf16.msra.mxu0 0
        %559 = vmatprep.subr.bf16.mxu0 0
        %560 = vmatpush1.bf16.msra.mxu0 0
        %561 = vmatprep.subr.bf16.mxu0 0
        %562 = vmatpush1.bf16.msra.mxu0 0
        %563 = vmatprep.subr.bf16.mxu0 0
        %564 = vmatpush1.bf16.msra.mxu0 0
        %565 = vmatprep.subr.bf16.mxu0 0
        %566 = vmatpush1.bf16.msra.mxu0 0
        %567 = vmatprep.mubr.bf16.mxu0 0
        %568 = vmatmul.mubr.bf16.gmra.mrb[0].mxu0 %v450
        %v569 = vpop.f32.mrb[0].mxu0
        %v570 = vadd.f32 0.0, %v569
        %v571 = vpop.f32.mrb[0].mxu0
        %v572 = vpop.f32.mrb[0].mxu0
        %v573 = vadd.f32 0.0, %v572
        %v574 = vpop.f32.mrb[0].mxu0
        %575 = vdwg.mxu0
        %v576 = vrot.slane %v487, 7
        %v577 = vrot.slane %v490, 7
        %vm578 = vcmp.lt.s32.totalorder %v405, 1
        %v579 = vsel %vm578, %v576, %v577
        %v580 = vsel %vm578, %v577, %v576
        %v581 = vsel %vm407, 0.0, %v580
        %v582 = vsel %vm408, 0.0, %v579
        %v583 = vrot.slane %v570, 1
        %v584 = vrot.slane %v573, 1
        %vm585 = vcmp.lt.s32.totalorder %v405, 7
        %v586 = vsel %vm585, %v583, %v584
        %v587 = vsel %vm585, %v584, %v583
        %v588 = vsel %vm409, 0.0, %v586
        %v589 = vsel %vm410, 0.0, %v587
        %v598 = vunpack.c.l.b16 %v494
        %v599 = vunpack.c.l.b16 %v495
        %v600 = vunpack.c.l.b16 %v496
        %v601 = vunpack.c.l.b16 %v497
        %v602 = vunpack.c.l.b16 %v498
        %v603 = vunpack.c.l.b16 %v499
        %v604 = vunpack.c.l.b16 %v500
        %v605 = vunpack.c.l.b16 %v501
        %v606 = vpack.c.b16 %v599, %v598
        %v607 = vpack.c.b16 %v601, %v600
        %v608 = vpack.c.b16 %v603, %v602
        %v609 = vpack.c.b16 %v605, %v604
        %614 = vmatprep.subr.bf16.mxu0 0
        %615 = vmatpush1.bf16.msra.mxu0 %v606
        %616 = vmatprep.subr.bf16.mxu0 0
        %617 = vmatpush1.bf16.msra.mxu0 %v607
        %618 = vmatprep.subr.bf16.mxu0 0
        %619 = vmatpush1.bf16.msra.mxu0 %v608
        %620 = vmatprep.subr.bf16.mxu0 0
        %621 = vmatpush1.bf16.msra.mxu0 %v609
        %622 = vmatprep.subr.bf16.mxu0 0
        %623 = vmatpush1.bf16.msra.mxu0 0
        %624 = vmatprep.subr.bf16.mxu0 0
        %625 = vmatpush1.bf16.msra.mxu0 0
        %626 = vmatprep.subr.bf16.mxu0 0
        %627 = vmatpush1.bf16.msra.mxu0 0
        %628 = vmatprep.subr.bf16.mxu0 0
        %629 = vmatpush1.bf16.msra.mxu0 0
        %630 = vmatprep.subr.bf16.mxu0 0
        %631 = vmatpush1.bf16.msra.mxu0 0
        %632 = vmatprep.subr.bf16.mxu0 0
        %633 = vmatpush1.bf16.msra.mxu0 0
        %634 = vmatprep.subr.bf16.mxu0 0
        %635 = vmatpush1.bf16.msra.mxu0 0
        %636 = vmatprep.subr.bf16.mxu0 0
        %637 = vmatpush1.bf16.msra.mxu0 0
        %638 = vmatprep.subr.bf16.mxu0 0
        %639 = vmatpush1.bf16.msra.mxu0 0
        %640 = vmatprep.subr.bf16.mxu0 0
        %641 = vmatpush1.bf16.msra.mxu0 0
        %642 = vmatprep.subr.bf16.mxu0 0
        %643 = vmatpush1.bf16.msra.mxu0 0
        %644 = vmatprep.subr.bf16.mxu0 0
        %645 = vmatpush1.bf16.msra.mxu0 0
        %646 = vmatprep.mubr.bf16.mxu0 0
        %647 = vmatmul.mubr.bf16.gmra.mrb[0].mxu0 %v450
        %v648 = vpop.f32.mrb[0].mxu0
        %v649 = vadd.f32 %v581, %v648
        %v650 = vpop.f32.mrb[0].mxu0
        %v651 = vpop.f32.mrb[0].mxu0
        %v652 = vadd.f32 %v582, %v651
        %v653 = vpop.f32.mrb[0].mxu0
        %654 = vdwg.mxu0
        %v655 = vadd.f32 %v649, %v588
        %v656 = vadd.f32 %v652, %v589
        %v657 = vlaneseq
        %v658 = vshrl.u32 %v657, 7
        %v659 = vsub.s32 0, %v658
        %v660 = vrot.slane %v403, %v659
        %v661 = vadd.f32 %v655, %v660
        %v662 = vadd.f32 %v656, %v660
        %v663 = vmul.f32 %v661, 0.5
        %v664 = vmul.f32 %v662, 0.5
        %v665 = vmul.f32 %v661, %v661
        %v666 = vmul.f32 %v662, %v662
        %v667 = vmul.f32 %v665, %v661
        %v668 = vmul.f32 %v666, %v662
        %v669 = vmul.f32 %v667, 0.044715
        %v670 = vmul.f32 %v668, 0.044715
        %v671 = vadd.f32 %v661, %v669
        %v672 = vadd.f32 %v662, %v670
        %v673 = vmul.f32 %v671, 0.7978846
        %v674 = vmul.f32 %v672, 0.7978846
        %v675 = vtanh.pop %v673
        %v676 = vtanh.pop %v674
        %v677 = vadd.f32 %v675, 1.0
        %v678 = vadd.f32 %v676, 1.0
        %v679 = vmul.f32 %v663, %v677
        %v680 = vmul.f32 %v664, %v678
        %v681 = vlaneseq
        %v682 = vshrl.u32 %v681, 7
        %v683 = vsub.s32 1, %v682
        %v684 = vrot.slane %v403, %v683
        %v685 = vmul.f32 %v679, %v684
        %v686 = vmul.f32 %v680, %v684
        %v687 = vlaneseq
        %v688 = vshrl.u32 %v687, 7
        %v689 = vsub.s32 2, %v688
        %v690 = vrot.slane %v403, %v689
        %v691 = vadd.f32 %v685, %v690
        %v692 = vadd.f32 %v686, %v690
        %v693 = vpack.c.bf16 %v692, %v691
        %v694 = vld [vmem:[#allocation2] sm:$0xf]
        %v695 = vld [vmem:[#allocation2 + $0x4] sm:$0xf]
        %v696 = vld [vmem:[#allocation2 + $0x8] sm:$0xf]
        %v697 = vld [vmem:[#allocation2 + $0xc] sm:$0xf]
        %v698 = vld [vmem:[#allocation2 + $0x10] sm:$0xf]
        %v699 = vld [vmem:[#allocation2 + $0x14] sm:$0xf]
        %v700 = vld [vmem:[#allocation2 + $0x18] sm:$0xf]
        %v701 = vld [vmem:[#allocation2 + $0x1c] sm:$0xf]
        %v702 = vld [vmem:[#allocation2 + $0x20] sm:$0xf]
        %v703 = vld [vmem:[#allocation2 + $0x24] sm:$0xf]
        %v704 = vld [vmem:[#allocation2 + $0x28] sm:$0xf]
        %v705 = vld [vmem:[#allocation2 + $0x2c] sm:$0xf]
        %v706 = vld [vmem:[#allocation2 + $0x30] sm:$0xf]
        %v707 = vld [vmem:[#allocation2 + $0x34] sm:$0xf]
        %v708 = vld [vmem:[#allocation2 + $0x38] sm:$0xf]
        %v709 = vld [vmem:[#allocation2 + $0x3c] sm:$0xf]
        %v726 = vunpack.c.l.b16 %v694
        %v727 = vunpack.c.l.b16 %v695
        %v728 = vunpack.c.l.b16 %v696
        %v729 = vunpack.c.l.b16 %v697
        %v730 = vunpack.c.l.b16 %v698
        %v731 = vunpack.c.l.b16 %v699
        %v732 = vunpack.c.l.b16 %v700
        %v733 = vunpack.c.l.b16 %v701
        %v734 = vunpack.c.l.b16 %v702
        %v735 = vunpack.c.l.b16 %v703
        %v736 = vunpack.c.l.b16 %v704
        %v737 = vunpack.c.l.b16 %v705
        %v738 = vunpack.c.l.b16 %v706
        %v739 = vunpack.c.l.b16 %v707
        %v740 = vunpack.c.l.b16 %v708
        %v741 = vunpack.c.l.b16 %v709
        %v742 = vpack.c.b16 %v727, %v726
        %v743 = vpack.c.b16 %v729, %v728
        %v744 = vpack.c.b16 %v731, %v730
        %v745 = vpack.c.b16 %v733, %v732
        %v746 = vpack.c.b16 %v735, %v734
        %v747 = vpack.c.b16 %v737, %v736
        %v748 = vpack.c.b16 %v739, %v738
        %v749 = vpack.c.b16 %v741, %v740
        %758 = vmatprep.subr.bf16.mxu0 0
        %759 = vmatpush1.bf16.msra.mxu0 %v742
        %760 = vmatprep.subr.bf16.mxu0 0
        %761 = vmatpush1.bf16.msra.mxu0 %v743
        %762 = vmatprep.subr.bf16.mxu0 0
        %763 = vmatpush1.bf16.msra.mxu0 %v744
        %764 = vmatprep.subr.bf16.mxu0 0
        %765 = vmatpush1.bf16.msra.mxu0 %v745
        %766 = vmatprep.subr.bf16.mxu0 0
        %767 = vmatpush1.bf16.msra.mxu0 %v746
        %768 = vmatprep.subr.bf16.mxu0 0
        %769 = vmatpush1.bf16.msra.mxu0 %v747
        %770 = vmatprep.subr.bf16.mxu0 0
        %771 = vmatpush1.bf16.msra.mxu0 %v748
        %772 = vmatprep.subr.bf16.mxu0 0
        %773 = vmatpush1.bf16.msra.mxu0 %v749
        %774 = vmatprep.subr.bf16.mxu0 0
        %775 = vmatpush1.bf16.msra.mxu0 0
        %776 = vmatprep.subr.bf16.mxu0 0
        %777 = vmatpush1.bf16.msra.mxu0 0
        %778 = vmatprep.subr.bf16.mxu0 0
        %779 = vmatpush1.bf16.msra.mxu0 0
        %780 = vmatprep.subr.bf16.mxu0 0
        %781 = vmatpush1.bf16.msra.mxu0 0
        %782 = vmatprep.subr.bf16.mxu0 0
        %783 = vmatpush1.bf16.msra.mxu0 0
        %784 = vmatprep.subr.bf16.mxu0 0
        %785 = vmatpush1.bf16.msra.mxu0 0
        %786 = vmatprep.subr.bf16.mxu0 0
        %787 = vmatpush1.bf16.msra.mxu0 0
        %788 = vmatprep.subr.bf16.mxu0 0
        %789 = vmatpush1.bf16.msra.mxu0 0
        %790 = vmatprep.mubr.bf16.mxu0 0
        %791 = vmatmul.mubr.bf16.gmra.mrb[0].mxu0 %v693
        %v792 = vpop.f32.mrb[0].mxu0
        %v793 = vadd.f32 0.0, %v792
        %v794 = vpop.f32.mrb[0].mxu0
        %v795 = vpop.f32.mrb[0].mxu0
        %v796 = vadd.f32 0.0, %v795
        %v797 = vpop.f32.mrb[0].mxu0
        %798 = vdwg.mxu0
        %s799 = scalar_lea.vmem [#allocation2], 64
        %v800 = vld [vmem:[%s799] sm:$0xf]
        %v801 = vld [vmem:[%s799 + $0x4] sm:$0xf]
        %v802 = vld [vmem:[%s799 + $0x8] sm:$0xf]
        %v803 = vld [vmem:[%s799 + $0xc] sm:$0xf]
        %v804 = vld [vmem:[%s799 + $0x10] sm:$0xf]
        %v805 = vld [vmem:[%s799 + $0x14] sm:$0xf]
        %v806 = vld [vmem:[%s799 + $0x18] sm:$0xf]
        %v807 = vld [vmem:[%s799 + $0x1c] sm:$0xf]
        %v808 = vld [vmem:[%s799 + $0x20] sm:$0xf]
        %v809 = vld [vmem:[%s799 + $0x24] sm:$0xf]
        %v810 = vld [vmem:[%s799 + $0x28] sm:$0xf]
        %v811 = vld [vmem:[%s799 + $0x2c] sm:$0xf]
        %v812 = vld [vmem:[%s799 + $0x30] sm:$0xf]
        %v813 = vld [vmem:[%s799 + $0x34] sm:$0xf]
        %v814 = vld [vmem:[%s799 + $0x38] sm:$0xf]
        %v815 = vld [vmem:[%s799 + $0x3c] sm:$0xf]
        %s816 = scalar_lea.vmem [#allocation2], 128
        %v817 = vld [vmem:[%s816] sm:$0xf]
        %v818 = vld [vmem:[%s816 + $0x4] sm:$0xf]
        %v819 = vld [vmem:[%s816 + $0x8] sm:$0xf]
        %v820 = vld [vmem:[%s816 + $0xc] sm:$0xf]
        %v821 = vld [vmem:[%s816 + $0x10] sm:$0xf]
        %v822 = vld [vmem:[%s816 + $0x14] sm:$0xf]
        %v823 = vld [vmem:[%s816 + $0x18] sm:$0xf]
        %v824 = vld [vmem:[%s816 + $0x1c] sm:$0xf]
        %v825 = vld [vmem:[%s816 + $0x20] sm:$0xf]
        %v826 = vld [vmem:[%s816 + $0x24] sm:$0xf]
        %v827 = vld [vmem:[%s816 + $0x28] sm:$0xf]
        %v828 = vld [vmem:[%s816 + $0x2c] sm:$0xf]
        %v829 = vld [vmem:[%s816 + $0x30] sm:$0xf]
        %v830 = vld [vmem:[%s816 + $0x34] sm:$0xf]
        %v831 = vld [vmem:[%s816 + $0x38] sm:$0xf]
        %v832 = vld [vmem:[%s816 + $0x3c] sm:$0xf]
        %v849 = vunpack.c.l.b16 %v817
        %v850 = vunpack.c.l.b16 %v818
        %v851 = vunpack.c.l.b16 %v819
        %v852 = vunpack.c.l.b16 %v820
        %v853 = vunpack.c.l.b16 %v821
        %v854 = vunpack.c.l.b16 %v822
        %v855 = vunpack.c.l.b16 %v823
        %v856 = vunpack.c.l.b16 %v824
        %v857 = vunpack.c.l.b16 %v825
        %v858 = vunpack.c.l.b16 %v826
        %v859 = vunpack.c.l.b16 %v827
        %v860 = vunpack.c.l.b16 %v828
        %v861 = vunpack.c.l.b16 %v829
        %v862 = vunpack.c.l.b16 %v830
        %v863 = vunpack.c.l.b16 %v831
        %v864 = vunpack.c.l.b16 %v832
        %v865 = vpack.c.b16 %v850, %v849
        %v866 = vpack.c.b16 %v852, %v851
        %v867 = vpack.c.b16 %v854, %v853
        %v868 = vpack.c.b16 %v856, %v855
        %v869 = vpack.c.b16 %v858, %v857
        %v870 = vpack.c.b16 %v860, %v859
        %v871 = vpack.c.b16 %v862, %v861
        %v872 = vpack.c.b16 %v864, %v863
        %881 = vmatprep.subr.bf16.mxu0 0
        %882 = vmatpush1.bf16.msra.mxu0 %v865
        %883 = vmatprep.subr.bf16.mxu0 0
        %884 = vmatpush1.bf16.msra.mxu0 %v866
        %885 = vmatprep.subr.bf16.mxu0 0
        %886 = vmatpush1.bf16.msra.mxu0 %v867
        %887 = vmatprep.subr.bf16.mxu0 0
        %888 = vmatpush1.bf16.msra.mxu0 %v868
        %889 = vmatprep.subr.bf16.mxu0 0
        %890 = vmatpush1.bf16.msra.mxu0 %v869
        %891 = vmatprep.subr.bf16.mxu0 0
        %892 = vmatpush1.bf16.msra.mxu0 %v870
        %893 = vmatprep.subr.bf16.mxu0 0
        %894 = vmatpush1.bf16.msra.mxu0 %v871
        %895 = vmatprep.subr.bf16.mxu0 0
        %896 = vmatpush1.bf16.msra.mxu0 %v872
        %897 = vmatprep.subr.bf16.mxu0 0
        %898 = vmatpush1.bf16.msra.mxu0 0
        %899 = vmatprep.subr.bf16.mxu0 0
        %900 = vmatpush1.bf16.msra.mxu0 0
        %901 = vmatprep.subr.bf16.mxu0 0
        %902 = vmatpush1.bf16.msra.mxu0 0
        %903 = vmatprep.subr.bf16.mxu0 0
        %904 = vmatpush1.bf16.msra.mxu0 0
        %905 = vmatprep.subr.bf16.mxu0 0
        %906 = vmatpush1.bf16.msra.mxu0 0
        %907 = vmatprep.subr.bf16.mxu0 0
        %908 = vmatpush1.bf16.msra.mxu0 0
        %909 = vmatprep.subr.bf16.mxu0 0
        %910 = vmatpush1.bf16.msra.mxu0 0
        %911 = vmatprep.subr.bf16.mxu0 0
        %912 = vmatpush1.bf16.msra.mxu0 0
        %913 = vmatprep.mubr.bf16.mxu0 0
        %914 = vmatmul.mubr.bf16.gmra.mrb[0].mxu0 %v693
        %v915 = vpop.f32.mrb[0].mxu0
        %v916 = vadd.f32 0.0, %v915
        %v917 = vpop.f32.mrb[0].mxu0
        %v918 = vpop.f32.mrb[0].mxu0
        %v919 = vadd.f32 0.0, %v918
        %v920 = vpop.f32.mrb[0].mxu0
        %921 = vdwg.mxu0
        %v922 = vrot.slane %v793, 7
        %v923 = vrot.slane %v796, 7
        %v924 = vsel %vm578, %v922, %v923
        %v925 = vsel %vm578, %v923, %v922
        %v926 = vsel %vm407, 0.0, %v925
        %v927 = vsel %vm408, 0.0, %v924
        %v928 = vrot.slane %v916, 1
        %v929 = vrot.slane %v919, 1
        %v930 = vsel %vm585, %v928, %v929
        %v931 = vsel %vm585, %v929, %v928
        %v932 = vsel %vm409, 0.0, %v930
        %v933 = vsel %vm410, 0.0, %v931
        %v950 = vunpack.c.l.b16 %v800
        %v951 = vunpack.c.l.b16 %v801
        %v952 = vunpack.c.l.b16 %v802
        %v953 = vunpack.c.l.b16 %v803
        %v954 = vunpack.c.l.b16 %v804
        %v955 = vunpack.c.l.b16 %v805
        %v956 = vunpack.c.l.b16 %v806
        %v957 = vunpack.c.l.b16 %v807
        %v958 = vunpack.c.l.b16 %v808
        %v959 = vunpack.c.l.b16 %v809
        %v960 = vunpack.c.l.b16 %v810
        %v961 = vunpack.c.l.b16 %v811
        %v962 = vunpack.c.l.b16 %v812
        %v963 = vunpack.c.l.b16 %v813
        %v964 = vunpack.c.l.b16 %v814
        %v965 = vunpack.c.l.b16 %v815
        %v966 = vpack.c.b16 %v951, %v950
        %v967 = vpack.c.b16 %v953, %v952
        %v968 = vpack.c.b16 %v955, %v954
        %v969 = vpack.c.b16 %v957, %v956
        %v970 = vpack.c.b16 %v959, %v958
        %v971 = vpack.c.b16 %v961, %v960
        %v972 = vpack.c.b16 %v963, %v962
        %v973 = vpack.c.b16 %v965, %v964
        %982 = vmatprep.subr.bf16.mxu0 0
        %983 = vmatpush1.bf16.msra.mxu0 %v966
        %984 = vmatprep.subr.bf16.mxu0 0
        %985 = vmatpush1.bf16.msra.mxu0 %v967
        %986 = vmatprep.subr.bf16.mxu0 0
        %987 = vmatpush1.bf16.msra.mxu0 %v968
        %988 = vmatprep.subr.bf16.mxu0 0
        %989 = vmatpush1.bf16.msra.mxu0 %v969
        %990 = vmatprep.subr.bf16.mxu0 0
        %991 = vmatpush1.bf16.msra.mxu0 %v970
        %992 = vmatprep.subr.bf16.mxu0 0
        %993 = vmatpush1.bf16.msra.mxu0 %v971
        %994 = vmatprep.subr.bf16.mxu0 0
        %995 = vmatpush1.bf16.msra.mxu0 %v972
        %996 = vmatprep.subr.bf16.mxu0 0
        %997 = vmatpush1.bf16.msra.mxu0 %v973
        %998 = vmatprep.subr.bf16.mxu0 0
        %999 = vmatpush1.bf16.msra.mxu0 0
        %1000 = vmatprep.subr.bf16.mxu0 0
        %1001 = vmatpush1.bf16.msra.mxu0 0
        %1002 = vmatprep.subr.bf16.mxu0 0
        %1003 = vmatpush1.bf16.msra.mxu0 0
        %1004 = vmatprep.subr.bf16.mxu0 0
        %1005 = vmatpush1.bf16.msra.mxu0 0
        %1006 = vmatprep.subr.bf16.mxu0 0
        %1007 = vmatpush1.bf16.msra.mxu0 0
        %1008 = vmatprep.subr.bf16.mxu0 0
        %1009 = vmatpush1.bf16.msra.mxu0 0
        %1010 = vmatprep.subr.bf16.mxu0 0
        %1011 = vmatpush1.bf16.msra.mxu0 0
        %1012 = vmatprep.subr.bf16.mxu0 0
        %1013 = vmatpush1.bf16.msra.mxu0 0
        %1014 = vmatprep.mubr.bf16.mxu0 0
        %1015 = vmatmul.mubr.bf16.gmra.mrb[0].mxu0 %v693
        %v1016 = vpop.f32.mrb[0].mxu0
        %v1017 = vadd.f32 %v926, %v1016
        %v1018 = vpop.f32.mrb[0].mxu0
        %v1019 = vpop.f32.mrb[0].mxu0
        %v1020 = vadd.f32 %v927, %v1019
        %v1021 = vpop.f32.mrb[0].mxu0
        %1022 = vdwg.mxu0
        %v1023 = vadd.f32 %v1017, %v932
        %v1024 = vadd.f32 %v1020, %v933
        %v1025 = vlaneseq
        %v1026 = vshrl.u32 %v1025, 7
        %v1027 = vsub.s32 3, %v1026
        %v1028 = vrot.slane %v403, %v1027
        %v1029 = vadd.f32 %v1023, %v1028
        %v1030 = vadd.f32 %v1024, %v1028
        %v1031 = vmul.f32 %v1029, 0.5
        %v1032 = vmul.f32 %v1030, 0.5
        %v1033 = vmul.f32 %v1029, %v1029
        %v1034 = vmul.f32 %v1030, %v1030
        %v1035 = vmul.f32 %v1033, %v1029
        %v1036 = vmul.f32 %v1034, %v1030
        %v1037 = vmul.f32 %v1035, 0.044715
        %v1038 = vmul.f32 %v1036, 0.044715
        %v1039 = vadd.f32 %v1029, %v1037
        %v1040 = vadd.f32 %v1030, %v1038
        %v1041 = vmul.f32 %v1039, 0.7978846
        %v1042 = vmul.f32 %v1040, 0.7978846
        %v1043 = vtanh.pop %v1041
        %v1044 = vtanh.pop %v1042
        %v1045 = vadd.f32 %v1043, 1.0
        %v1046 = vadd.f32 %v1044, 1.0
        %v1047 = vmul.f32 %v1031, %v1045
        %v1048 = vmul.f32 %v1032, %v1046
        %v1049 = vlaneseq
        %v1050 = vshrl.u32 %v1049, 7
        %v1051 = vsub.s32 4, %v1050
        %v1052 = vrot.slane %v403, %v1051
        %v1053 = vmul.f32 %v1047, %v1052
        %v1054 = vmul.f32 %v1048, %v1052
        %v1055 = vlaneseq
        %v1056 = vshrl.u32 %v1055, 7
        %v1057 = vsub.s32 5, %v1056
        %v1058 = vrot.slane %v403, %v1057
        %v1059 = vadd.f32 %v1053, %v1058
        %v1060 = vadd.f32 %v1054, %v1058
        %v1061 = vld [vmem:[%s3] sm:$0xf]
        %v1062 = vld [vmem:[%s3 + $0x4] sm:$0xf]
        %v1063 = vld [vmem:[%s3 + $0x8] sm:$0xf]
        %v1064 = vld [vmem:[%s3 + $0xc] sm:$0xf]
        %v1065 = vld [vmem:[%s3 + $0x10] sm:$0xf]
        %v1066 = vld [vmem:[%s3 + $0x14] sm:$0xf]
        %v1067 = vld [vmem:[%s3 + $0x18] sm:$0xf]
        %v1068 = vld [vmem:[%s3 + $0x1c] sm:$0xf]
        %v1077 = vunpack.c.l.b16 %v1061
        %v1078 = vunpack.c.l.b16 %v1062
        %v1079 = vunpack.c.l.b16 %v1063
        %v1080 = vunpack.c.l.b16 %v1064
        %v1081 = vunpack.c.l.b16 %v1065
        %v1082 = vunpack.c.l.b16 %v1066
        %v1083 = vunpack.c.l.b16 %v1067
        %v1084 = vunpack.c.l.b16 %v1068
        %v1085 = vpack.c.b16 %v1078, %v1077
        %v1086 = vpack.c.b16 %v1080, %v1079
        %v1087 = vpack.c.b16 %v1082, %v1081
        %v1088 = vpack.c.b16 %v1084, %v1083
        %1093 = vmatprep.subr.bf16.mxu0 0
        %1094 = vmatpush1.bf16.msra.mxu0 %v1085
        %1095 = vmatprep.subr.bf16.mxu0 0
        %1096 = vmatpush1.bf16.msra.mxu0 %v1086
        %1097 = vmatprep.subr.bf16.mxu0 0
        %1098 = vmatpush1.bf16.msra.mxu0 %v1087
        %1099 = vmatprep.subr.bf16.mxu0 0
        %1100 = vmatpush1.bf16.msra.mxu0 %v1088
        %1101 = vmatprep.subr.bf16.mxu0 0
        %1102 = vmatpush1.bf16.msra.mxu0 0
        %1103 = vmatprep.subr.bf16.mxu0 0
        %1104 = vmatpush1.bf16.msra.mxu0 0
        %1105 = vmatprep.subr.bf16.mxu0 0
        %1106 = vmatpush1.bf16.msra.mxu0 0
        %1107 = vmatprep.subr.bf16.mxu0 0
        %1108 = vmatpush1.bf16.msra.mxu0 0
        %1109 = vmatprep.subr.bf16.mxu0 0
        %1110 = vmatpush1.bf16.msra.mxu0 0
        %1111 = vmatprep.subr.bf16.mxu0 0
        %1112 = vmatpush1.bf16.msra.mxu0 0
        %1113 = vmatprep.subr.bf16.mxu0 0
        %1114 = vmatpush1.bf16.msra.mxu0 0
        %1115 = vmatprep.subr.bf16.mxu0 0
        %1116 = vmatpush1.bf16.msra.mxu0 0
        %1117 = vmatprep.subr.bf16.mxu0 0
        %1118 = vmatpush1.bf16.msra.mxu0 0
        %1119 = vmatprep.subr.bf16.mxu0 0
        %1120 = vmatpush1.bf16.msra.mxu0 0
        %1121 = vmatprep.subr.bf16.mxu0 0
        %1122 = vmatpush1.bf16.msra.mxu0 0
        %1123 = vmatprep.subr.bf16.mxu0 0
        %1124 = vmatpush1.bf16.msra.mxu0 0
        %1125 = vmatprep.mubr.bf16.mxu0 0
        %1126 = vmatmul.mubr.bf16.gmra.mrb[0].mxu0 %v450
        %v1127 = vpop.f32.mrb[0].mxu0
        %v1128 = vadd.f32 0.0, %v1127
        %v1129 = vpop.f32.mrb[0].mxu0
        %v1130 = vpop.f32.mrb[0].mxu0
        %v1131 = vadd.f32 0.0, %v1130
        %v1132 = vpop.f32.mrb[0].mxu0
        %1133 = vdwg.mxu0
        %v1134 = vlaneseq
        %v1135 = vshrl.u32 %v1134, 7
        %v1136 = vsub.s32 6, %v1135
        %v1137 = vrot.slane %v403, %v1136
        %v1138 = vmul.f32 %v1128, %v1137
        %v1139 = vmul.f32 %v1131, %v1137
        %v1140 = vlaneseq
        %v1141 = vshrl.u32 %v1140, 7
        %v1142 = vsub.s32 7, %v1141
        %v1143 = vrot.slane %v403, %v1142
        %v1144 = vadd.f32 %v1138, %v1143
        %v1145 = vadd.f32 %v1139, %v1143
        %v1146 = vadd.f32 %v1144, %v1145
        %v1147 = vrot.slane %v1146, 4
        %v1148 = vadd.f32 %v1146, %v1147
        %v1149 = vrot.slane %v1148, 2
        %v1150 = vadd.f32 %v1148, %v1149
        %v1151 = vrot.slane %v1150, 1
        %v1152 = vadd.f32 %v1150, %v1151
        %v1153 = vld [vmem:[%s4] sm:$0xff]
        %v1154 = vld [vmem:[%s4 + $0x8] sm:$0xff]
        %v1155 = vld [vmem:[%s4 + $0x10] sm:$0xff]
        %v1156 = vld [vmem:[%s4 + $0x18] sm:$0xff]
        %v1157 = vld [vmem:[%s4 + $0x20] sm:$0xff]
        %v1158 = vld [vmem:[%s4 + $0x28] sm:$0xff]
        %v1159 = vld [vmem:[%s4 + $0x30] sm:$0xff]
        %v1160 = vld [vmem:[%s4 + $0x38] sm:$0xff]
        %v1161 = vld [vmem:[%s4 + $0x40] sm:$0xff]
        %v1162 = vld [vmem:[%s4 + $0x48] sm:$0xff]
        %v1163 = vld [vmem:[%s4 + $0x50] sm:$0xff]
        %v1164 = vld [vmem:[%s4 + $0x58] sm:$0xff]
        %v1165 = vld [vmem:[%s4 + $0x60] sm:$0xff]
        %v1166 = vld [vmem:[%s4 + $0x68] sm:$0xff]
        %v1167 = vld [vmem:[%s4 + $0x70] sm:$0xff]
        %v1168 = vld [vmem:[%s4 + $0x78] sm:$0xff]
        %1169 = vmatprep.subr.mxu0 0.0
        %1170 = vmatpush1.msra.mxu0 %v1153
        %1171 = vmatprep.subr.mxu0 0.0
        %1172 = vmatpush1.msra.mxu0 %v1154
        %1173 = vmatprep.subr.mxu0 0.0
        %1174 = vmatpush1.msra.mxu0 %v1155
        %1175 = vmatprep.subr.mxu0 0.0
        %1176 = vmatpush1.msra.mxu0 %v1156
        %1177 = vmatprep.subr.mxu0 0.0
        %1178 = vmatpush1.msra.mxu0 %v1157
        %1179 = vmatprep.subr.mxu0 0.0
        %1180 = vmatpush1.msra.mxu0 %v1158
        %1181 = vmatprep.subr.mxu0 0.0
        %1182 = vmatpush1.msra.mxu0 %v1159
        %1183 = vmatprep.subr.mxu0 0.0
        %1184 = vmatpush1.msra.mxu0 %v1160
        %1185 = vmatprep.subr.mxu0 0.0
        %1186 = vmatpush1.msra.mxu0 %v1161
        %1187 = vmatprep.subr.mxu0 0.0
        %1188 = vmatpush1.msra.mxu0 %v1162
        %1189 = vmatprep.subr.mxu0 0.0
        %1190 = vmatpush1.msra.mxu0 %v1163
        %1191 = vmatprep.subr.mxu0 0.0
        %1192 = vmatpush1.msra.mxu0 %v1164
        %1193 = vmatprep.subr.mxu0 0.0
        %1194 = vmatpush1.msra.mxu0 %v1165
        %1195 = vmatprep.subr.mxu0 0.0
        %1196 = vmatpush1.msra.mxu0 %v1166
        %1197 = vmatprep.subr.mxu0 0.0
        %1198 = vmatpush1.msra.mxu0 %v1167
        %1199 = vmatprep.subr.mxu0 0.0
        %1200 = vmatpush1.msra.mxu0 %v1168
        %1201 = vmatprep.subr.mxu0 0.0
        %1202 = vmatpush1.msra.mxu0 0.0
        %1203 = vmatprep.subr.mxu0 0.0
        %1204 = vmatpush1.msra.mxu0 0.0
        %1205 = vmatprep.subr.mxu0 0.0
        %1206 = vmatpush1.msra.mxu0 0.0
        %1207 = vmatprep.subr.mxu0 0.0
        %1208 = vmatpush1.msra.mxu0 0.0
        %1209 = vmatprep.subr.mxu0 0.0
        %1210 = vmatpush1.msra.mxu0 0.0
        %1211 = vmatprep.subr.mxu0 0.0
        %1212 = vmatpush1.msra.mxu0 0.0
        %1213 = vmatprep.subr.mxu0 0.0
        %1214 = vmatpush1.msra.mxu0 0.0
        %1215 = vmatprep.subr.mxu0 0.0
        %1216 = vmatpush1.msra.mxu0 0.0
        %1217 = vmatprep.subr.mxu0 0.0
        %1218 = vmatpush1.msra.mxu0 0.0
        %1219 = vmatprep.subr.mxu0 0.0
        %1220 = vmatpush1.msra.mxu0 0.0
        %1221 = vmatprep.subr.mxu0 0.0
        %1222 = vmatpush1.msra.mxu0 0.0
        %1223 = vmatprep.subr.mxu0 0.0
        %1224 = vmatpush1.msra.mxu0 0.0
        %1225 = vmatprep.subr.mxu0 0.0
        %1226 = vmatpush1.msra.mxu0 0.0
        %1227 = vmatprep.subr.mxu0 0.0
        %1228 = vmatpush1.msra.mxu0 0.0
        %1229 = vmatprep.subr.mxu0 0.0
        %1230 = vmatpush1.msra.mxu0 0.0
        %1231 = vmatprep.subr.mxu0 0.0
        %1232 = vmatpush1.msra.mxu0 0.0
        %1233 = vmatprep.mubr.f32.mxu0 0.0
        %1234 = vmatmul.mubr.f32.gmra.mrb[0].mxu0 %v1152
        %v1235 = vpop.f32.mrb[0].mxu0
        %v1236 = vadd.f32 0.0, %v1235
        %v1237 = vpop.f32.mrb[0].mxu0
        %1238 = vdwg.mxu0
        %v1239 = vmul.f32 %v1236, 0.00390625
        %v1240 = vld [vmem:[%s5] sm:$0xff]
        %v1241 = vld [vmem:[%s9] sm:$0x1]
        %vm1242 = vcmask 64512
        %v1244 = vsel %vm1242, %v1239, 0
        %1246 = vmatprep.subr.mxu0 0.0
        %1247 = vmatpush1.msra.mxu0 %v1240
        %1248 = vmatprep.subr.mxu0 0.0
        %1249 = vmatpush1.msra.mxu0 0.0
        %1250 = vmatprep.subr.mxu0 0.0
        %1251 = vmatpush1.msra.mxu0 0.0
        %1252 = vmatprep.subr.mxu0 0.0
        %1253 = vmatpush1.msra.mxu0 0.0
        %1254 = vmatprep.subr.mxu0 0.0
        %1255 = vmatpush1.msra.mxu0 0.0
        %1256 = vmatprep.subr.mxu0 0.0
        %1257 = vmatpush1.msra.mxu0 0.0
        %1258 = vmatprep.subr.mxu0 0.0
        %1259 = vmatpush1.msra.mxu0 0.0
        %1260 = vmatprep.subr.mxu0 0.0
        %1261 = vmatpush1.msra.mxu0 0.0
        %1262 = vmatprep.subr.mxu0 0.0
        %1263 = vmatpush1.msra.mxu0 0.0
        %1264 = vmatprep.subr.mxu0 0.0
        %1265 = vmatpush1.msra.mxu0 0.0
        %1266 = vmatprep.subr.mxu0 0.0
        %1267 = vmatpush1.msra.mxu0 0.0
        %1268 = vmatprep.subr.mxu0 0.0
        %1269 = vmatpush1.msra.mxu0 0.0
        %1270 = vmatprep.subr.mxu0 0.0
        %1271 = vmatpush1.msra.mxu0 0.0
        %1272 = vmatprep.subr.mxu0 0.0
        %1273 = vmatpush1.msra.mxu0 0.0
        %1274 = vmatprep.subr.mxu0 0.0
        %1275 = vmatpush1.msra.mxu0 0.0
        %1276 = vmatprep.subr.mxu0 0.0
        %1277 = vmatpush1.msra.mxu0 0.0
        %1278 = vmatprep.subr.mxu0 0.0
        %1279 = vmatpush1.msra.mxu0 0.0
        %1280 = vmatprep.subr.mxu0 0.0
        %1281 = vmatpush1.msra.mxu0 0.0
        %1282 = vmatprep.subr.mxu0 0.0
        %1283 = vmatpush1.msra.mxu0 0.0
        %1284 = vmatprep.subr.mxu0 0.0
        %1285 = vmatpush1.msra.mxu0 0.0
        %1286 = vmatprep.subr.mxu0 0.0
        %1287 = vmatpush1.msra.mxu0 0.0
        %1288 = vmatprep.subr.mxu0 0.0
        %1289 = vmatpush1.msra.mxu0 0.0
        %1290 = vmatprep.subr.mxu0 0.0
        %1291 = vmatpush1.msra.mxu0 0.0
        %1292 = vmatprep.subr.mxu0 0.0
        %1293 = vmatpush1.msra.mxu0 0.0
        %1294 = vmatprep.subr.mxu0 0.0
        %1295 = vmatpush1.msra.mxu0 0.0
        %1296 = vmatprep.subr.mxu0 0.0
        %1297 = vmatpush1.msra.mxu0 0.0
        %1298 = vmatprep.subr.mxu0 0.0
        %1299 = vmatpush1.msra.mxu0 0.0
        %1300 = vmatprep.subr.mxu0 0.0
        %1301 = vmatpush1.msra.mxu0 0.0
        %1302 = vmatprep.subr.mxu0 0.0
        %1303 = vmatpush1.msra.mxu0 0.0
        %1304 = vmatprep.subr.mxu0 0.0
        %1305 = vmatpush1.msra.mxu0 0.0
        %1306 = vmatprep.subr.mxu0 0.0
        %1307 = vmatpush1.msra.mxu0 0.0
        %1308 = vmatprep.subr.mxu0 0.0
        %1309 = vmatpush1.msra.mxu0 0.0
        %1310 = vmatprep.mubr.f32.mxu0 0.0
        %1311 = vmatmul.mubr.f32.gmra.mrb[0].mxu0 %v1244
        %v1312 = vpop.f32.mrb[0].mxu0
        %v1313 = vadd.f32 %v1241, %v1312
        %v1314 = vpop.f32.mrb[0].mxu0
        %1315 = vdwg.mxu0
        %v1316 = vxor.u32 %v1313, 2147483648
        %v1317 = vmul.f32 %v1316, 1.442695
        %v1318 = vpow.pop %v1317
        %v1319 = vadd.f32 %v1318, 1.0
        %v1320 = vrcp.pop %v1319
        %v1321 = vmul.f32 1.0, %v1320
        %v1322 = vmul.f32 %v1313, %v1321
        %v1323 = vld [vmem:[%s6] sm:$0xff]
        %v1324 = vld [vmem:[%s6 + $0x8] sm:$0xff]
        %v1325 = vld [vmem:[%s10] sm:$0x1]
        %vm1326 = vcmask 130048
        %v1328 = vsel %vm1326, %v1322, 0
        %1330 = vmatprep.subr.mxu0 0.0
        %1331 = vmatpush1.msra.mxu0 %v1323
        %1332 = vmatprep.subr.mxu0 0.0
        %1333 = vmatpush1.msra.mxu0 %v1324
        %1334 = vmatprep.subr.mxu0 0.0
        %1335 = vmatpush1.msra.mxu0 0.0
        %1336 = vmatprep.subr.mxu0 0.0
        %1337 = vmatpush1.msra.mxu0 0.0
        %1338 = vmatprep.subr.mxu0 0.0
        %1339 = vmatpush1.msra.mxu0 0.0
        %1340 = vmatprep.subr.mxu0 0.0
        %1341 = vmatpush1.msra.mxu0 0.0
        %1342 = vmatprep.subr.mxu0 0.0
        %1343 = vmatpush1.msra.mxu0 0.0
        %1344 = vmatprep.subr.mxu0 0.0
        %1345 = vmatpush1.msra.mxu0 0.0
        %1346 = vmatprep.subr.mxu0 0.0
        %1347 = vmatpush1.msra.mxu0 0.0
        %1348 = vmatprep.subr.mxu0 0.0
        %1349 = vmatpush1.msra.mxu0 0.0
        %1350 = vmatprep.subr.mxu0 0.0
        %1351 = vmatpush1.msra.mxu0 0.0
        %1352 = vmatprep.subr.mxu0 0.0
        %1353 = vmatpush1.msra.mxu0 0.0
        %1354 = vmatprep.subr.mxu0 0.0
        %1355 = vmatpush1.msra.mxu0 0.0
        %1356 = vmatprep.subr.mxu0 0.0
        %1357 = vmatpush1.msra.mxu0 0.0
        %1358 = vmatprep.subr.mxu0 0.0
        %1359 = vmatpush1.msra.mxu0 0.0
        %1360 = vmatprep.subr.mxu0 0.0
        %1361 = vmatpush1.msra.mxu0 0.0
        %1362 = vmatprep.subr.mxu0 0.0
        %1363 = vmatpush1.msra.mxu0 0.0
        %1364 = vmatprep.subr.mxu0 0.0
        %1365 = vmatpush1.msra.mxu0 0.0
        %1366 = vmatprep.subr.mxu0 0.0
        %1367 = vmatpush1.msra.mxu0 0.0
        %1368 = vmatprep.subr.mxu0 0.0
        %1369 = vmatpush1.msra.mxu0 0.0
        %1370 = vmatprep.subr.mxu0 0.0
        %1371 = vmatpush1.msra.mxu0 0.0
        %1372 = vmatprep.subr.mxu0 0.0
        %1373 = vmatpush1.msra.mxu0 0.0
        %1374 = vmatprep.subr.mxu0 0.0
        %1375 = vmatpush1.msra.mxu0 0.0
        %1376 = vmatprep.subr.mxu0 0.0
        %1377 = vmatpush1.msra.mxu0 0.0
        %1378 = vmatprep.subr.mxu0 0.0
        %1379 = vmatpush1.msra.mxu0 0.0
        %1380 = vmatprep.subr.mxu0 0.0
        %1381 = vmatpush1.msra.mxu0 0.0
        %1382 = vmatprep.subr.mxu0 0.0
        %1383 = vmatpush1.msra.mxu0 0.0
        %1384 = vmatprep.subr.mxu0 0.0
        %1385 = vmatpush1.msra.mxu0 0.0
        %1386 = vmatprep.subr.mxu0 0.0
        %1387 = vmatpush1.msra.mxu0 0.0
        %1388 = vmatprep.subr.mxu0 0.0
        %1389 = vmatpush1.msra.mxu0 0.0
        %1390 = vmatprep.subr.mxu0 0.0
        %1391 = vmatpush1.msra.mxu0 0.0
        %1392 = vmatprep.subr.mxu0 0.0
        %1393 = vmatpush1.msra.mxu0 0.0
        %1394 = vmatprep.mubr.f32.mxu0 0.0
        %1395 = vmatmul.mubr.f32.gmra.mrb[0].mxu0 %v1328
        %v1396 = vpop.f32.mrb[0].mxu0
        %v1397 = vadd.f32 %v1325, %v1396
        %v1398 = vpop.f32.mrb[0].mxu0
        %1399 = vdwg.mxu0
        %v1400 = vxor.u32 %v1397, 2147483648
        %v1401 = vmul.f32 %v1400, 1.442695
        %v1402 = vpow.pop %v1401
        %v1403 = vadd.f32 %v1402, 1.0
        %v1404 = vrcp.pop %v1403
        %v1405 = vmul.f32 1.0, %v1404
        %v1406 = vld [vmem:[%s7] sm:$0xff]
        %v1408 = vsel %vm1242, %v1405, 0
        %1410 = vmatprep.subr.mxu0 0.0
        %1411 = vmatpush1.msra.mxu0 %v1406
        %1412 = vmatprep.subr.mxu0 0.0
        %1413 = vmatpush1.msra.mxu0 0.0
        %1414 = vmatprep.subr.mxu0 0.0
        %1415 = vmatpush1.msra.mxu0 0.0
        %1416 = vmatprep.subr.mxu0 0.0
        %1417 = vmatpush1.msra.mxu0 0.0
        %1418 = vmatprep.subr.mxu0 0.0
        %1419 = vmatpush1.msra.mxu0 0.0
        %1420 = vmatprep.subr.mxu0 0.0
        %1421 = vmatpush1.msra.mxu0 0.0
        %1422 = vmatprep.subr.mxu0 0.0
        %1423 = vmatpush1.msra.mxu0 0.0
        %1424 = vmatprep.subr.mxu0 0.0
        %1425 = vmatpush1.msra.mxu0 0.0
        %1426 = vmatprep.subr.mxu0 0.0
        %1427 = vmatpush1.msra.mxu0 0.0
        %1428 = vmatprep.subr.mxu0 0.0
        %1429 = vmatpush1.msra.mxu0 0.0
        %1430 = vmatprep.subr.mxu0 0.0
        %1431 = vmatpush1.msra.mxu0 0.0
        %1432 = vmatprep.subr.mxu0 0.0
        %1433 = vmatpush1.msra.mxu0 0.0
        %1434 = vmatprep.subr.mxu0 0.0
        %1435 = vmatpush1.msra.mxu0 0.0
        %1436 = vmatprep.subr.mxu0 0.0
        %1437 = vmatpush1.msra.mxu0 0.0
        %1438 = vmatprep.subr.mxu0 0.0
        %1439 = vmatpush1.msra.mxu0 0.0
        %1440 = vmatprep.subr.mxu0 0.0
        %1441 = vmatpush1.msra.mxu0 0.0
        %1442 = vmatprep.subr.mxu0 0.0
        %1443 = vmatpush1.msra.mxu0 0.0
        %1444 = vmatprep.subr.mxu0 0.0
        %1445 = vmatpush1.msra.mxu0 0.0
        %1446 = vmatprep.subr.mxu0 0.0
        %1447 = vmatpush1.msra.mxu0 0.0
        %1448 = vmatprep.subr.mxu0 0.0
        %1449 = vmatpush1.msra.mxu0 0.0
        %1450 = vmatprep.subr.mxu0 0.0
        %1451 = vmatpush1.msra.mxu0 0.0
        %1452 = vmatprep.subr.mxu0 0.0
        %1453 = vmatpush1.msra.mxu0 0.0
        %1454 = vmatprep.subr.mxu0 0.0
        %1455 = vmatpush1.msra.mxu0 0.0
        %1456 = vmatprep.subr.mxu0 0.0
        %1457 = vmatpush1.msra.mxu0 0.0
        %1458 = vmatprep.subr.mxu0 0.0
        %1459 = vmatpush1.msra.mxu0 0.0
        %1460 = vmatprep.subr.mxu0 0.0
        %1461 = vmatpush1.msra.mxu0 0.0
        %1462 = vmatprep.subr.mxu0 0.0
        %1463 = vmatpush1.msra.mxu0 0.0
        %1464 = vmatprep.subr.mxu0 0.0
        %1465 = vmatpush1.msra.mxu0 0.0
        %1466 = vmatprep.subr.mxu0 0.0
        %1467 = vmatpush1.msra.mxu0 0.0
        %1468 = vmatprep.subr.mxu0 0.0
        %1469 = vmatpush1.msra.mxu0 0.0
        %1470 = vmatprep.subr.mxu0 0.0
        %1471 = vmatpush1.msra.mxu0 0.0
        %1472 = vmatprep.subr.mxu0 0.0
        %1473 = vmatpush1.msra.mxu0 0.0
        %1474 = vmatprep.mubr.f32.mxu0 0.0
        %1475 = vmatmul.mubr.f32.gmra.mrb[0].mxu0 %v1408
        %v1476 = vpop.f32.mrb[0].mxu0
        %v1477 = vadd.f32 0.0, %v1476
        %v1478 = vpop.f32.mrb[0].mxu0
        %1479 = vdwg.mxu0
        %v1480 = vlaneseq
        %v1481 = vshrl.u32 %v1480, 7
        %v1482 = vsub.s32 0, %v1481
        %v1483 = vrot.slane %v1477, %v1482
        %v1484 = vmul.f32 %v1144, %v1483
        %v1485 = vmul.f32 %v1145, %v1483
        %v1486 = vadd.f32 %v1059, %v1484
        %v1487 = vadd.f32 %v1060, %v1485
        %v1488 = vmax.f32 %v1486, 0.0
        %v1489 = vmax.f32 %v1487, 0.0
        %1490 = vst [vmem:[%s394] sm:$0xff] %v1488
        %1491 = vst [vmem:[%s394 + $0x8] sm:$0xff] %v1489
        %s1492 = sand.u32 %s270, 1
        %s1493 = scalar_lea.sflag [#allocation4], %s1492
        %s1494 = sand.u32 %s270, 1
        %s1495 = smul.addr %s1494, 16
        %s1496 = scalar_lea.vmem [#allocation5], %s1495
        // Predicated region
        $region69: #{tpu_custom_call.1} parent=63 // pred_check
          %p1497 = pneg %p280
        $region70: #{tpu_custom_call.1} parent=63 // pred_check_branch
          %1499 = sbr.rel (%p1497) target = $region72
        $region71: #{tpu_custom_call.1} parent=63 // pred_region
          %s1501 = ssub.s32 256, 256
          %1502 = vsyncadd %s1493, %s1501
          %s1503 = smul.addr %s26, 2
          %s1504 = smul.addr %s1503, 128
          %s1505 = scalar_lea.hbm %s11, %s1504
          %s1506 = sshll.u32 %s1496, 4
          %s1507 = int_to_ptr.vmem [resolvable:$true] %s1506
          %1512 = dma.vmem_to_hbm [thread:$0]  %s1507, 256, %s1505, %s1493, 128, 128, 8
        $region72: #{tpu_custom_call.1} parent=63 // pred_fallthru
          _
      $region64: #{tpu_custom_call.1} parent=5 // pred_fallthru
        _
      %p1513 = scmp.le.s32.totalorder 2, %s21
      // Predicated region
      $region73: #{tpu_custom_call.1} parent=5 // pred_check
        %p1514 = pneg %p1513
      $region74: #{tpu_custom_call.1} parent=5 // pred_check_branch
        %1516 = sbr.rel (%p1514) target = $region76
      $region75: #{tpu_custom_call.1} parent=5 // pred_region
        %s1517 = ssub.s32 %s21, 2
        // Predicated region
        $region77: #{tpu_custom_call.1} parent=75 // pred_check
          %p1518 = pneg %p286
        $region78: #{tpu_custom_call.1} parent=75 // pred_check_branch
          %1520 = sbr.rel (%p1518) target = $region80
        $region79: #{tpu_custom_call.1} parent=75 // pred_region
          %s1521 = sand.u32 %s271, 1
          %s1522 = scalar_lea.sflag [#allocation4], %s1521
          %s1523 = sand.u32 %s271, 1
          %s1524 = smul.addr %s1523, 16
          %s1525 = scalar_lea.vmem [#allocation5], %s1524
          %1526 = dma.done %s1522, 256
        $region80: #{tpu_custom_call.1} parent=75 // pred_fallthru
          _
      $region76: #{tpu_custom_call.1} parent=5 // pred_fallthru
        _
    $region6: #{tpu_custom_call.1} parent=1 // loop_footer
      %s25 = sadd.s32 1, %s21
    $region7: #{tpu_custom_call.1} parent=1 // loop_footer_branch
      %20 = sbr.rel target = $region3
    $region8: #{tpu_custom_call.1} parent=1 // loop_exit
      _
    %1527 = vsyncpa [#allocation3], 1
    %s1528 = scalar_lea.sflag [#allocation3], 1
    %1529 = vsyncpa %s1528, 1
    %1530 = vsyncpa [#allocation4], 1
    %s1531 = scalar_lea.sflag [#allocation4], 1
    %1532 = vsyncpa %s1531, 1

</llo_original>
